<compile_context>
chip_gen: v5e
topology: v5e:2x2
jax: 0.10.0
libtpu: 0.0.40
codegen_flags: <defaults>
</compile_context>

<pallas_src>
import jax
import jax.numpy as jnp
from jax.experimental import pallas as pl
from jax.experimental.pallas import tpu as pltpu

LANE = 128  # TPU lane width; feature dims are zero-padded to this multiple.


def _leaky_relu(v, slope=0.1):
    return jnp.where(v > 0, v, slope * v)


def autoencoder_kernel(
    x_ref,                              # (TB, D_in_p) bf16
    ew1, eb1, ew2, eb2, ew3, eb3,       # encoder: W (in,out) bf16, b (1,out) f32
    dw1, db1, dw2, db2, dw3, db3,       # decoder params
    enc_out_ref, dec_out_ref,
):
    def layer(h_bf16, w_ref, b_ref):
        y = jnp.dot(h_bf16, w_ref[...], preferred_element_type=jnp.float32)
        return _leaky_relu(y + b_ref[...])        # bias + activation in f32

    x = x_ref[...]

    # ---- encoder ----
    h = layer(x, ew1, eb1)
    h = layer(h.astype(jnp.bfloat16), ew2, eb2)
    z = layer(h.astype(jnp.bfloat16), ew3, eb3)   # (TB, Z_p) f32, padded lanes are exactly 0
    enc_out_ref[...] = z.astype(enc_out_ref.dtype)

    # ---- decoder ----
    h = layer(z.astype(jnp.bfloat16), dw1, db1)
    h = layer(h.astype(jnp.bfloat16), dw2, db2)
    y = layer(h.astype(jnp.bfloat16), dw3, db3)
    # sigmoid = 1 / (1 + exp(-y)); exp + approx reciprocal both ride the EUP slot.
    dec_out_ref[...] = pl.reciprocal(1.0 + jnp.exp(-y), approx=True).astype(
        dec_out_ref.dtype)


def _pad_to(n, m):
    return ((n + m - 1) // m) * m


def _pad2d(a, rows, cols):
    pr, pc = rows - a.shape[0], cols - a.shape[1]
    if pr == 0 and pc == 0:
        return a
    return jnp.pad(a, ((0, pr), (0, pc)))


def autoencoder_forward(x, params, *, block_b=128):
    """x: (B, input_shape) f32.  params: flat [W, b] * 6, W: (in, out), b: (1, out)."""
    B, d_in = x.shape
    z_dim = params[4].shape[1]
    d_out = params[10].shape[1]

    # Pad batch to a multiple of the batch tile, feature dims to multiples of 128.
    Bp = _pad_to(B, block_b)
    xp = _pad2d(x, Bp, _pad_to(d_in, LANE)).astype(jnp.bfloat16)

    padded_params = []
    for li in range(6):
        W, b = params[2 * li], params[2 * li + 1]
        fin_p = _pad_to(W.shape[0], LANE)
        fout_p = _pad_to(W.shape[1], LANE)
        padded_params.append(_pad2d(W, fin_p, fout_p).astype(jnp.bfloat16))
        padded_params.append(_pad2d(b, 1, fout_p).astype(jnp.float32))

    zp = _pad_to(z_dim, LANE)
    dp = _pad_to(d_out, LANE)

    def tile_spec(shape):
        # Batch-tiled array: block index follows the grid step along dim 0.
        return pl.BlockSpec(shape, lambda i: (i, 0))

    def const_spec(shape):
        # Weight/bias resident in VMEM: same (0, ...) block for every grid step.
        return pl.BlockSpec(shape, lambda i, nd=len(shape): (0,) * nd)

    grid = (Bp // block_b,)
    in_specs = [tile_spec((block_b, xp.shape[1]))] + [
        const_spec(p.shape) for p in padded_params
    ]
    out_shapes = (
        jax.ShapeDtypeStruct((Bp, zp), jnp.float32),
        jax.ShapeDtypeStruct((Bp, dp), jnp.float32),
    )
    out_specs = (
        tile_spec((block_b, zp)),
        tile_spec((block_b, dp)),
    )

    enc_p, dec_p = pl.pallas_call(
        autoencoder_kernel,
        out_shape=out_shapes,
        grid=grid,
        in_specs=in_specs,
        out_specs=out_specs,
        compiler_params=pltpu.CompilerParams(
            # Batch tiles are independent -> megacore-shard on v7x, harmless elsewhere.
            dimension_semantics=("parallel",),
        ),
    )(xp, *padded_params)

    return enc_p[:B, :z_dim], dec_p[:B, :d_out]


def init_params(key, input_shape, n_hidden, z_dim, num_of_hidden_layers):
    """PyTorch-style uniform(-1/sqrt(fan_in), 1/sqrt(fan_in)) init.

    Returns flat list [W, b, W, b, ...] for encoder then decoder, with weights
    stored as (in_features, out_features) so y = x @ W + b."""
    def layer_dims(first_in, last_out):
        dims = []
        for i in range(num_of_hidden_layers + 1):
            fin = first_in if i == 0 else n_hidden
            fout = n_hidden if i != num_of_hidden_layers else last_out
            dims.append((fin, fout))
        return dims

    dims = layer_dims(input_shape, z_dim) + layer_dims(z_dim, input_shape)
    params = []
    for (fin, fout) in dims:
        key, kw, kb = jax.random.split(key, 3)
        bound = 1.0 / jnp.sqrt(fin)
        W = jax.random.uniform(kw, (fin, fout), jnp.float32, -bound, bound)
        b = jax.random.uniform(kb, (1, fout), jnp.float32, -bound, bound)
        params += [W, b]
    return params


def reference_forward(x, params):
    """Pure-JAX reference mirroring the PyTorch module, using the same bf16
    quantization of matmul inputs/weights the kernel uses (f32 accumulation)."""
    def leaky(v):
        return jnp.where(v > 0, v, 0.1 * v)

    def q(v):  # bf16 quantize, matching the kernel's MXU input precision
        return v.astype(jnp.bfloat16).astype(jnp.float32)

    h = x.astype(jnp.float32)
    z = None
    for i in range(6):
        W, b = params[2 * i], params[2 * i + 1]
        h = leaky(jnp.dot(q(h), q(W), preferred_element_type=jnp.float32) + b)
        if i == 2:
            z = h
    return z, jax.nn.sigmoid(h)


if __name__ == "__main__":
    B = 256             # two 128-row batch tiles -> exercises the grid / megacore path
    INPUT_SHAPE = 256   # 16x16 image, flattened
    N_HIDDEN = 128
    Z_DIM = 32          # padded to 128 lanes inside the kernel path
    NUM_HIDDEN_LAYERS = 2

    key = jax.random.PRNGKey(0)
    key, kx = jax.random.split(key)
    x = jax.random.uniform(kx, (B, INPUT_SHAPE), jnp.float32)

    params = init_params(key, INPUT_SHAPE, N_HIDDEN, Z_DIM, NUM_HIDDEN_LAYERS)

    enc, dec = autoencoder_forward(x, params)
    jax.block_until_ready((enc, dec))

    enc_ref, dec_ref = reference_forward(x, params)
    assert enc.shape == (B, Z_DIM) and dec.shape == (B, INPUT_SHAPE)
    assert jnp.allclose(enc, enc_ref, atol=1e-3, rtol=1e-3), \
        float(jnp.max(jnp.abs(enc - enc_ref)))
    # decoder uses the EUP approximate reciprocal for sigmoid -> slightly looser.
    assert jnp.allclose(dec, dec_ref, atol=5e-3, rtol=5e-3), \
        float(jnp.max(jnp.abs(dec - dec_ref)))

    print("KERNEL_OK")
</pallas_src>

<mosaic_0001>
module attributes {stable_mosaic.version = 11 : i64} {
  func.func @autoencoder_kernel(%arg0: i32, %arg1: memref<128x256xbf16, #tpu.memory_space<vmem>>, %arg2: memref<256x128xbf16, #tpu.memory_space<vmem>>, %arg3: memref<1x128xf32, #tpu.memory_space<vmem>>, %arg4: memref<128x128xbf16, #tpu.memory_space<vmem>>, %arg5: memref<1x128xf32, #tpu.memory_space<vmem>>, %arg6: memref<128x128xbf16, #tpu.memory_space<vmem>>, %arg7: memref<1x128xf32, #tpu.memory_space<vmem>>, %arg8: memref<128x128xbf16, #tpu.memory_space<vmem>>, %arg9: memref<1x128xf32, #tpu.memory_space<vmem>>, %arg10: memref<128x128xbf16, #tpu.memory_space<vmem>>, %arg11: memref<1x128xf32, #tpu.memory_space<vmem>>, %arg12: memref<128x256xbf16, #tpu.memory_space<vmem>>, %arg13: memref<1x256xf32, #tpu.memory_space<vmem>>, %arg14: memref<128x128xf32, #tpu.memory_space<vmem>>, %arg15: memref<128x256xf32, #tpu.memory_space<vmem>>) attributes {dimension_semantics = [#tpu.dimension_semantics<parallel>], iteration_bounds = array<i64: 2>, scalar_prefetch = 0 : i64, scratch_operands = 0 : i64, tpu.core_type = #tpu.core_type<tc>, window_params = [{transform_indices = @transform_0, window_bounds = array<i64: 128, 256>}, {pipeline_mode = #tpu.pipeline_mode<synchronous>, transform_indices = @transform_1, window_bounds = array<i64: 256, 128>}, {pipeline_mode = #tpu.pipeline_mode<synchronous>, transform_indices = @transform_2, window_bounds = array<i64: 1, 128>}, {pipeline_mode = #tpu.pipeline_mode<synchronous>, transform_indices = @transform_3, window_bounds = array<i64: 128, 128>}, {pipeline_mode = #tpu.pipeline_mode<synchronous>, transform_indices = @transform_4, window_bounds = array<i64: 1, 128>}, {pipeline_mode = #tpu.pipeline_mode<synchronous>, transform_indices = @transform_5, window_bounds = array<i64: 128, 128>}, {pipeline_mode = #tpu.pipeline_mode<synchronous>, transform_indices = @transform_6, window_bounds = array<i64: 1, 128>}, {pipeline_mode = #tpu.pipeline_mode<synchronous>, transform_indices = @transform_7, window_bounds = array<i64: 128, 128>}, {pipeline_mode = #tpu.pipeline_mode<synchronous>, transform_indices = @transform_8, window_bounds = array<i64: 1, 128>}, {pipeline_mode = #tpu.pipeline_mode<synchronous>, transform_indices = @transform_9, window_bounds = array<i64: 128, 128>}, {pipeline_mode = #tpu.pipeline_mode<synchronous>, transform_indices = @transform_10, window_bounds = array<i64: 1, 128>}, {pipeline_mode = #tpu.pipeline_mode<synchronous>, transform_indices = @transform_11, window_bounds = array<i64: 128, 256>}, {pipeline_mode = #tpu.pipeline_mode<synchronous>, transform_indices = @transform_12, window_bounds = array<i64: 1, 256>}, {transform_indices = @transform_13, window_bounds = array<i64: 128, 128>}, {transform_indices = @transform_14, window_bounds = array<i64: 128, 256>}]} {
    %c0 = arith.constant 0 : index
    %c0_0 = arith.constant 0 : index
    %0 = vector.load %arg1[%c0, %c0_0] : memref<128x256xbf16, #tpu.memory_space<vmem>>, vector<128x256xbf16>
    %c0_1 = arith.constant 0 : index
    %c0_2 = arith.constant 0 : index
    %1 = vector.load %arg2[%c0_1, %c0_2] : memref<256x128xbf16, #tpu.memory_space<vmem>>, vector<256x128xbf16>
    %cst = arith.constant dense<0.000000e+00> : vector<128x128xf32>
    %2 = tpu.matmul %0, %1, %cst {dimension_numbers = #tpu.dot_dimension_numbers<[1], [0], [0], [1], [0, 0, 1, 1], [], []>} : vector<128x256xbf16>, vector<256x128xbf16>, vector<128x128xf32> -> vector<128x128xf32>
    %c0_3 = arith.constant 0 : index
    %c0_4 = arith.constant 0 : index
    %3 = vector.load %arg3[%c0_3, %c0_4] : memref<1x128xf32, #tpu.memory_space<vmem>>, vector<1x128xf32>
    %4 = vector.broadcast %3 : vector<1x128xf32> to vector<128x128xf32>
    %5 = arith.addf %2, %4 : vector<128x128xf32>
    %cst_5 = arith.constant 0.000000e+00 : f32
    %6 = vector.broadcast %cst_5 : f32 to vector<128x128xf32>
    %7 = arith.cmpf ogt, %5, %6 : vector<128x128xf32>
    %cst_6 = arith.constant 1.000000e-01 : f32
    %8 = vector.broadcast %cst_6 : f32 to vector<128x128xf32>
    %9 = arith.mulf %8, %5 : vector<128x128xf32>
    %10 = arith.select %7, %5, %9 : vector<128x128xi1>, vector<128x128xf32>
    %11 = arith.truncf %10 : vector<128x128xf32> to vector<128x128xbf16>
    %c0_7 = arith.constant 0 : index
    %c0_8 = arith.constant 0 : index
    %12 = vector.load %arg4[%c0_7, %c0_8] : memref<128x128xbf16, #tpu.memory_space<vmem>>, vector<128x128xbf16>
    %cst_9 = arith.constant dense<0.000000e+00> : vector<128x128xf32>
    %13 = tpu.matmul %11, %12, %cst_9 {dimension_numbers = #tpu.dot_dimension_numbers<[1], [0], [0], [1], [0, 0, 1, 1], [], []>} : vector<128x128xbf16>, vector<128x128xbf16>, vector<128x128xf32> -> vector<128x128xf32>
    %c0_10 = arith.constant 0 : index
    %c0_11 = arith.constant 0 : index
    %14 = vector.load %arg5[%c0_10, %c0_11] : memref<1x128xf32, #tpu.memory_space<vmem>>, vector<1x128xf32>
    %15 = vector.broadcast %14 : vector<1x128xf32> to vector<128x128xf32>
    %16 = arith.addf %13, %15 : vector<128x128xf32>
    %cst_12 = arith.constant 0.000000e+00 : f32
    %17 = vector.broadcast %cst_12 : f32 to vector<128x128xf32>
    %18 = arith.cmpf ogt, %16, %17 : vector<128x128xf32>
    %cst_13 = arith.constant 1.000000e-01 : f32
    %19 = vector.broadcast %cst_13 : f32 to vector<128x128xf32>
    %20 = arith.mulf %19, %16 : vector<128x128xf32>
    %21 = arith.select %18, %16, %20 : vector<128x128xi1>, vector<128x128xf32>
    %22 = arith.truncf %21 : vector<128x128xf32> to vector<128x128xbf16>
    %c0_14 = arith.constant 0 : index
    %c0_15 = arith.constant 0 : index
    %23 = vector.load %arg6[%c0_14, %c0_15] : memref<128x128xbf16, #tpu.memory_space<vmem>>, vector<128x128xbf16>
    %cst_16 = arith.constant dense<0.000000e+00> : vector<128x128xf32>
    %24 = tpu.matmul %22, %23, %cst_16 {dimension_numbers = #tpu.dot_dimension_numbers<[1], [0], [0], [1], [0, 0, 1, 1], [], []>} : vector<128x128xbf16>, vector<128x128xbf16>, vector<128x128xf32> -> vector<128x128xf32>
    %c0_17 = arith.constant 0 : index
    %c0_18 = arith.constant 0 : index
    %25 = vector.load %arg7[%c0_17, %c0_18] : memref<1x128xf32, #tpu.memory_space<vmem>>, vector<1x128xf32>
    %26 = vector.broadcast %25 : vector<1x128xf32> to vector<128x128xf32>
    %27 = arith.addf %24, %26 : vector<128x128xf32>
    %cst_19 = arith.constant 0.000000e+00 : f32
    %28 = vector.broadcast %cst_19 : f32 to vector<128x128xf32>
    %29 = arith.cmpf ogt, %27, %28 : vector<128x128xf32>
    %cst_20 = arith.constant 1.000000e-01 : f32
    %30 = vector.broadcast %cst_20 : f32 to vector<128x128xf32>
    %31 = arith.mulf %30, %27 : vector<128x128xf32>
    %32 = arith.select %29, %27, %31 : vector<128x128xi1>, vector<128x128xf32>
    %c0_21 = arith.constant 0 : index
    %c0_22 = arith.constant 0 : index
    %33 = vector.load %arg14[%c0_21, %c0_22] : memref<128x128xf32, #tpu.memory_space<vmem>>, vector<128x128xf32>
    tpu.vector_store %arg14[%c0_21, %c0_22], %32 {strides = array<i32>} : memref<128x128xf32, #tpu.memory_space<vmem>>, vector<128x128xf32>,
    %34 = arith.truncf %32 : vector<128x128xf32> to vector<128x128xbf16>
    %c0_23 = arith.constant 0 : index
    %c0_24 = arith.constant 0 : index
    %35 = vector.load %arg8[%c0_23, %c0_24] : memref<128x128xbf16, #tpu.memory_space<vmem>>, vector<128x128xbf16>
    %cst_25 = arith.constant dense<0.000000e+00> : vector<128x128xf32>
    %36 = tpu.matmul %34, %35, %cst_25 {dimension_numbers = #tpu.dot_dimension_numbers<[1], [0], [0], [1], [0, 0, 1, 1], [], []>} : vector<128x128xbf16>, vector<128x128xbf16>, vector<128x128xf32> -> vector<128x128xf32>
    %c0_26 = arith.constant 0 : index
    %c0_27 = arith.constant 0 : index
    %37 = vector.load %arg9[%c0_26, %c0_27] : memref<1x128xf32, #tpu.memory_space<vmem>>, vector<1x128xf32>
    %38 = vector.broadcast %37 : vector<1x128xf32> to vector<128x128xf32>
    %39 = arith.addf %36, %38 : vector<128x128xf32>
    %cst_28 = arith.constant 0.000000e+00 : f32
    %40 = vector.broadcast %cst_28 : f32 to vector<128x128xf32>
    %41 = arith.cmpf ogt, %39, %40 : vector<128x128xf32>
    %cst_29 = arith.constant 1.000000e-01 : f32
    %42 = vector.broadcast %cst_29 : f32 to vector<128x128xf32>
    %43 = arith.mulf %42, %39 : vector<128x128xf32>
    %44 = arith.select %41, %39, %43 : vector<128x128xi1>, vector<128x128xf32>
    %45 = arith.truncf %44 : vector<128x128xf32> to vector<128x128xbf16>
    %c0_30 = arith.constant 0 : index
    %c0_31 = arith.constant 0 : index
    %46 = vector.load %arg10[%c0_30, %c0_31] : memref<128x128xbf16, #tpu.memory_space<vmem>>, vector<128x128xbf16>
    %cst_32 = arith.constant dense<0.000000e+00> : vector<128x128xf32>
    %47 = tpu.matmul %45, %46, %cst_32 {dimension_numbers = #tpu.dot_dimension_numbers<[1], [0], [0], [1], [0, 0, 1, 1], [], []>} : vector<128x128xbf16>, vector<128x128xbf16>, vector<128x128xf32> -> vector<128x128xf32>
    %c0_33 = arith.constant 0 : index
    %c0_34 = arith.constant 0 : index
    %48 = vector.load %arg11[%c0_33, %c0_34] : memref<1x128xf32, #tpu.memory_space<vmem>>, vector<1x128xf32>
    %49 = vector.broadcast %48 : vector<1x128xf32> to vector<128x128xf32>
    %50 = arith.addf %47, %49 : vector<128x128xf32>
    %cst_35 = arith.constant 0.000000e+00 : f32
    %51 = vector.broadcast %cst_35 : f32 to vector<128x128xf32>
    %52 = arith.cmpf ogt, %50, %51 : vector<128x128xf32>
    %cst_36 = arith.constant 1.000000e-01 : f32
    %53 = vector.broadcast %cst_36 : f32 to vector<128x128xf32>
    %54 = arith.mulf %53, %50 : vector<128x128xf32>
    %55 = arith.select %52, %50, %54 : vector<128x128xi1>, vector<128x128xf32>
    %56 = arith.truncf %55 : vector<128x128xf32> to vector<128x128xbf16>
    %c0_37 = arith.constant 0 : index
    %c0_38 = arith.constant 0 : index
    %57 = vector.load %arg12[%c0_37, %c0_38] : memref<128x256xbf16, #tpu.memory_space<vmem>>, vector<128x256xbf16>
    %cst_39 = arith.constant dense<0.000000e+00> : vector<128x256xf32>
    %58 = tpu.matmul %56, %57, %cst_39 {dimension_numbers = #tpu.dot_dimension_numbers<[1], [0], [0], [1], [0, 0, 1, 1], [], []>} : vector<128x128xbf16>, vector<128x256xbf16>, vector<128x256xf32> -> vector<128x256xf32>
    %c0_40 = arith.constant 0 : index
    %c0_41 = arith.constant 0 : index
    %59 = vector.load %arg13[%c0_40, %c0_41] : memref<1x256xf32, #tpu.memory_space<vmem>>, vector<1x256xf32>
    %60 = vector.broadcast %59 : vector<1x256xf32> to vector<128x256xf32>
    %61 = arith.addf %58, %60 : vector<128x256xf32>
    %cst_42 = arith.constant 0.000000e+00 : f32
    %62 = vector.broadcast %cst_42 : f32 to vector<128x256xf32>
    %63 = arith.cmpf ogt, %61, %62 : vector<128x256xf32>
    %cst_43 = arith.constant 1.000000e-01 : f32
    %64 = vector.broadcast %cst_43 : f32 to vector<128x256xf32>
    %65 = arith.mulf %64, %61 : vector<128x256xf32>
    %66 = arith.select %63, %61, %65 : vector<128x256xi1>, vector<128x256xf32>
    %cst_44 = arith.constant 0.000000e+00 : f32
    %67 = vector.broadcast %cst_44 : f32 to vector<128x256xf32>
    %68 = arith.subf %67, %66 : vector<128x256xf32>
    %69 = math.exp %68 : vector<128x256xf32>
    %cst_45 = arith.constant 1.000000e+00 : f32
    %70 = vector.broadcast %cst_45 : f32 to vector<128x256xf32>
    %71 = arith.addf %70, %69 : vector<128x256xf32>
    %72 = tpu.reciprocal %71 {approx = true} : vector<128x256xf32> -> vector<128x256xf32>
    %c0_46 = arith.constant 0 : index
    %c0_47 = arith.constant 0 : index
    %73 = vector.load %arg15[%c0_46, %c0_47] : memref<128x256xf32, #tpu.memory_space<vmem>>, vector<128x256xf32>
    tpu.vector_store %arg15[%c0_46, %c0_47], %72 {strides = array<i32>} : memref<128x256xf32, #tpu.memory_space<vmem>>, vector<128x256xf32>,
    return
  }
  func.func @transform_0(%arg0: i32) -> (i32, i32) {
    %c0_i32 = arith.constant 0 : i32
    %c0_i32_0 = arith.constant 0 : i32
    return %arg0, %c0_i32 : i32, i32
  }
  func.func @transform_1(%arg0: i32) -> (i32, i32) {
    %c0_i32 = arith.constant 0 : i32
    %c0_i32_0 = arith.constant 0 : i32
    %c0_i32_1 = arith.constant 0 : i32
    return %c0_i32, %c0_i32_0 : i32, i32
  }
  func.func @transform_2(%arg0: i32) -> (i32, i32) {
    %c0_i32 = arith.constant 0 : i32
    %c0_i32_0 = arith.constant 0 : i32
    %c0_i32_1 = arith.constant 0 : i32
    return %c0_i32, %c0_i32_0 : i32, i32
  }
  func.func @transform_3(%arg0: i32) -> (i32, i32) {
    %c0_i32 = arith.constant 0 : i32
    %c0_i32_0 = arith.constant 0 : i32
    %c0_i32_1 = arith.constant 0 : i32
    return %c0_i32, %c0_i32_0 : i32, i32
  }
  func.func @transform_4(%arg0: i32) -> (i32, i32) {
    %c0_i32 = arith.constant 0 : i32
    %c0_i32_0 = arith.constant 0 : i32
    %c0_i32_1 = arith.constant 0 : i32
    return %c0_i32, %c0_i32_0 : i32, i32
  }
  func.func @transform_5(%arg0: i32) -> (i32, i32) {
    %c0_i32 = arith.constant 0 : i32
    %c0_i32_0 = arith.constant 0 : i32
    %c0_i32_1 = arith.constant 0 : i32
    return %c0_i32, %c0_i32_0 : i32, i32
  }
  func.func @transform_6(%arg0: i32) -> (i32, i32) {
    %c0_i32 = arith.constant 0 : i32
    %c0_i32_0 = arith.constant 0 : i32
    %c0_i32_1 = arith.constant 0 : i32
    return %c0_i32, %c0_i32_0 : i32, i32
  }
  func.func @transform_7(%arg0: i32) -> (i32, i32) {
    %c0_i32 = arith.constant 0 : i32
    %c0_i32_0 = arith.constant 0 : i32
    %c0_i32_1 = arith.constant 0 : i32
    return %c0_i32, %c0_i32_0 : i32, i32
  }
  func.func @transform_8(%arg0: i32) -> (i32, i32) {
    %c0_i32 = arith.constant 0 : i32
    %c0_i32_0 = arith.constant 0 : i32
    %c0_i32_1 = arith.constant 0 : i32
    return %c0_i32, %c0_i32_0 : i32, i32
  }
  func.func @transform_9(%arg0: i32) -> (i32, i32) {
    %c0_i32 = arith.constant 0 : i32
    %c0_i32_0 = arith.constant 0 : i32
    %c0_i32_1 = arith.constant 0 : i32
    return %c0_i32, %c0_i32_0 : i32, i32
  }
  func.func @transform_10(%arg0: i32) -> (i32, i32) {
    %c0_i32 = arith.constant 0 : i32
    %c0_i32_0 = arith.constant 0 : i32
    %c0_i32_1 = arith.constant 0 : i32
    return %c0_i32, %c0_i32_0 : i32, i32
  }
  func.func @transform_11(%arg0: i32) -> (i32, i32) {
    %c0_i32 = arith.constant 0 : i32
    %c0_i32_0 = arith.constant 0 : i32
    %c0_i32_1 = arith.constant 0 : i32
    return %c0_i32, %c0_i32_0 : i32, i32
  }
  func.func @transform_12(%arg0: i32) -> (i32, i32) {
    %c0_i32 = arith.constant 0 : i32
    %c0_i32_0 = arith.constant 0 : i32
    %c0_i32_1 = arith.constant 0 : i32
    return %c0_i32, %c0_i32_0 : i32, i32
  }
  func.func @transform_13(%arg0: i32) -> (i32, i32) {
    %c0_i32 = arith.constant 0 : i32
    %c0_i32_0 = arith.constant 0 : i32
    return %arg0, %c0_i32 : i32, i32
  }
  func.func @transform_14(%arg0: i32) -> (i32, i32) {
    %c0_i32 = arith.constant 0 : i32
    %c0_i32_0 = arith.constant 0 : i32
    return %arg0, %c0_i32 : i32, i32
  }
}

</mosaic_0001>

<llo_original>
// kernel: tpu_custom_call.1
$region0: #{tpu_custom_call.1}
  #allocation0 [shape = 'u32[]', space=smem, size = 0x4, offset = 0x4, fixed_abs, tag = 'smem constant byte address 0x4 - core index']
  #allocation1 [shape = 'u32[72,128]{1,0:T(1,128)}', space=vmem, size = 0x9000, scoped, tag = 'internal scratch']
  %s0 = inlined_call_operand.hbm [shape: bf16[256,256], index: 0, kind: input, shape index: {}]
  %s1 = inlined_call_operand.hbm [shape: bf16[256,128], index: 1, kind: input, shape index: {}]
  %s2 = inlined_call_operand.vmem [shape: f32[1,128], index: 2, kind: input, shape index: {}]
  %s3 = inlined_call_operand.hbm [shape: bf16[128,128], index: 3, kind: input, shape index: {}]
  %s4 = inlined_call_operand.hbm [shape: f32[1,128], index: 4, kind: input, shape index: {}]
  %s5 = inlined_call_operand.hbm [shape: bf16[128,128], index: 5, kind: input, shape index: {}]
  %s6 = inlined_call_operand.vmem [shape: f32[1,128], index: 6, kind: input, shape index: {}]
  %s7 = inlined_call_operand.hbm [shape: bf16[128,128], index: 7, kind: input, shape index: {}]
  %s8 = inlined_call_operand.vmem [shape: f32[1,128], index: 8, kind: input, shape index: {}]
  %s9 = inlined_call_operand.hbm [shape: bf16[128,128], index: 9, kind: input, shape index: {}]
  %s10 = inlined_call_operand.vmem [shape: f32[1,128], index: 10, kind: input, shape index: {}]
  %s11 = inlined_call_operand.hbm [shape: bf16[128,256], index: 11, kind: input, shape index: {}]
  %s12 = inlined_call_operand.vmem [shape: f32[1,256], index: 12, kind: input, shape index: {}]
  %s13 = inlined_call_operand.hbm [shape: f32[256,128], index: 13, kind: output, shape index: {0}]
  %s14 = inlined_call_operand.hbm [shape: f32[256,256], index: 14, kind: output, shape index: {1}]
  %15 = xla_tuple %s13, %s14
  %s16 = sld [smem:[#allocation0]]
  $region125: #{tpu_custom_call.1} parent=0
    _
  %s18 = ssub.s32 1, %s16
  %s19 = scalar_select 0, %s18, %s16
  $region1: #{tpu_custom_call.1} parent=0
    #allocation2 [shape = 'u8[131072]{0}', space=vmem, size = 0x20000, scoped, tag = 'input window, operand 0']
    #allocation3 [shape = 's32[2]{0}', space=sflag, size = 0x8, scoped, tag = 'scoped memory for tpu_custom_call.1']
    #allocation4 [shape = 's32[2]{0}', space=sflag, size = 0x8, scoped, tag = 'scoped memory for tpu_custom_call.1']
    #allocation5 [shape = 'u8[65536]{0}', space=vmem, size = 0x10000, scoped, tag = 'input window, operand 1, single buffered']
    #allocation6 [shape = 's32[1]{0}', space=sflag, size = 0x4, scoped, tag = 'scoped memory for tpu_custom_call.1']
    #allocation7 [shape = 'u8[32768]{0}', space=vmem, size = 0x8000, scoped, tag = 'input window, operand 3, single buffered']
    #allocation8 [shape = 'u8[512]{0}', space=vmem, size = 0x400, scoped, tag = 'input window, operand 4, single buffered']
    #allocation9 [shape = 's32[1]{0}', space=sflag, size = 0x4, scoped, tag = 'scoped memory for tpu_custom_call.1']
    #allocation10 [shape = 'u8[32768]{0}', space=vmem, size = 0x8000, scoped, tag = 'input window, operand 5, single buffered']
    #allocation11 [shape = 'u8[32768]{0}', space=vmem, size = 0x8000, scoped, tag = 'input window, operand 7, single buffered']
    #allocation12 [shape = 's32[1]{0}', space=sflag, size = 0x4, scoped, tag = 'scoped memory for tpu_custom_call.1']
    #allocation13 [shape = 'u8[32768]{0}', space=vmem, size = 0x8000, scoped, tag = 'input window, operand 9, single buffered']
    #allocation14 [shape = 'u8[65536]{0}', space=vmem, size = 0x10000, scoped, tag = 'input window, operand 11, single buffered']
    #allocation15 [shape = 's32[1]{0}', space=sflag, size = 0x4, scoped, tag = 'scoped memory for tpu_custom_call.1']
    #allocation16 [shape = 'u8[131072]{0}', space=vmem, size = 0x20000, scoped, tag = 'output window, operand 0']
    #allocation17 [shape = 'u8[262144]{0}', space=vmem, size = 0x40000, scoped, tag = 'output window, operand 1']
    #allocation18 [shape = 's32[2]{0}', space=sflag, size = 0x8, scoped, tag = 'scoped memory for tpu_custom_call.1']
    %20 = vsyncpa [#allocation3], 0
    %s21 = scalar_lea.sflag [#allocation3], 1
    %22 = vsyncpa %s21, 0
    %23 = vsyncpa [#allocation6], 0
    %24 = vsyncpa [#allocation9], 0
    %25 = vsyncpa [#allocation12], 0
    %26 = vsyncpa [#allocation15], 0
    %27 = vsyncpa [#allocation4], 0
    %s28 = scalar_lea.sflag [#allocation4], 1
    %29 = vsyncpa %s28, 0
    %30 = vsyncpa [#allocation18], 0
    %s31 = scalar_lea.sflag [#allocation18], 1
    %32 = vsyncpa %s31, 0
    loop: start=0, step=1, limit=4
    $region2: #{tpu_custom_call.1} parent=1 // loop_pre_header
      _
    $region3: #{tpu_custom_call.1} parent=1 // loop_header
      %s34 = sphi 0, %s38
      %p35 = scmp.ge.s32.totalorder %s34, 4
      %s44 = sphi 0, %s46
      %s47 = sphi 0, %s44
      %s48 = sphi 0, %s47
      %s64 = sphi 0, %s48
      %s68 = sphi 0, %s68
      %s70 = sphi 0, %s68
      %s71 = sphi 0, %s70
      %s85 = sphi 0, %s71
      %s89 = sphi 0, %s89
      %s91 = sphi 0, %s89
      %s92 = sphi 0, %s91
      %s106 = sphi 0, %s92
      %s110 = sphi 0, %s110
      %s112 = sphi 0, %s110
      %s113 = sphi 0, %s112
      %s127 = sphi 0, %s113
      %s131 = sphi 0, %s131
      %s133 = sphi 0, %s131
      %s134 = sphi 0, %s133
      %s148 = sphi 0, %s134
      %s152 = sphi 0, %s152
      %s154 = sphi 0, %s152
      %s155 = sphi 0, %s154
      %s169 = sphi 0, %s155
      %s173 = sphi 0, %s173
      %s175 = sphi 0, %s173
      %s176 = sphi 0, %s175
      %s190 = sphi 0, %s176
      %s194 = sphi 0, %s194
      %s196 = sphi 0, %s194
      %s197 = sphi 0, %s196
      %s211 = sphi 0, %s197
      %s215 = sphi 0, %s215
      %s217 = sphi 0, %s215
      %s218 = sphi 0, %s217
      %s232 = sphi 0, %s218
      %s236 = sphi 0, %s236
      %s238 = sphi 0, %s236
      %s239 = sphi 0, %s238
      %s253 = sphi 0, %s239
      %s257 = sphi 0, %s257
      %s259 = sphi 0, %s257
      %s260 = sphi 0, %s259
      %s274 = sphi 0, %s260
      %s278 = sphi 0, %s278
      %s280 = sphi 0, %s278
      %s281 = sphi 0, %s280
      %s295 = sphi 0, %s281
      %s299 = sphi 0, %s299
      %s301 = sphi 0, %s299
      %s302 = sphi 0, %s301
      %s316 = sphi 0, %s302
      %s322 = sphi 0, %s324
      %s325 = sphi 0, %s322
      %s326 = sphi 0, %s325
      %s342 = sphi 0, %s326
      %s348 = sphi 0, %s350
      %s351 = sphi 0, %s348
      %s352 = sphi 0, %s351
      %s368 = sphi 0, %s352
    $region4: #{tpu_custom_call.1} parent=1 // loop_header_branch
      %37 = sbr.rel (%p35) target = $region8
    $region5: #{tpu_custom_call.1} parent=1 // loop_body
      %s39 = ssub.s32 %s34, 1
      %s40 = ssub.s32 %s34, 2
      %s41 = sadd.s32 %s34, 1
      %s42 = ssub.s32 %s34, %s41
      %p43 = scmp.eq.s32.totalorder %s42, 0
      %s45 = sadd.s32 %s44, 1
      %s46 = scalar_select %p43, %s44, %s45
      %p49 = pneg %p43
      %p50 = scmp.eq.s32.totalorder %s34, 1
      %p51 = por %p49, %p50
      %p52 = scmp.ne.s32.totalorder %s44, %s47
      %p53 = scmp.eq.s32.totalorder %s34, 0
      %p54 = por %p52, %p53
      %p55 = scmp.ne.s32.totalorder %s44, %s47
      %p56 = scmp.eq.s32.totalorder %s39, 1
      %p57 = por %p55, %p56
      %p58 = scmp.ne.s32.totalorder %s47, %s48
      %p59 = scmp.eq.s32.totalorder %s39, 0
      %p60 = por %p58, %p59
      %p61 = scmp.ne.s32.totalorder %s47, %s48
      %p62 = scmp.eq.s32.totalorder %s40, 1
      %p63 = por %p61, %p62
      %p65 = scmp.ne.s32.totalorder %s48, %s64
      %p66 = scmp.eq.s32.totalorder %s40, 0
      %p67 = por %p65, %p66
      %s69 = sadd.s32 %s68, 1
      %p72 = scmp.eq.s32.totalorder %s34, 1
      %p73 = scmp.ne.s32.totalorder %s68, %s70
      %p74 = scmp.eq.s32.totalorder %s34, 0
      %p75 = por %p73, %p74
      %p76 = scmp.ne.s32.totalorder %s68, %s70
      %p77 = scmp.eq.s32.totalorder %s39, 1
      %p78 = por %p76, %p77
      %p79 = scmp.ne.s32.totalorder %s70, %s71
      %p80 = scmp.eq.s32.totalorder %s39, 0
      %p81 = por %p79, %p80
      %p82 = scmp.ne.s32.totalorder %s70, %s71
      %p83 = scmp.eq.s32.totalorder %s40, 1
      %p84 = por %p82, %p83
      %p86 = scmp.ne.s32.totalorder %s71, %s85
      %p87 = scmp.eq.s32.totalorder %s40, 0
      %p88 = por %p86, %p87
      %s90 = sadd.s32 %s89, 1
      %p93 = scmp.eq.s32.totalorder %s34, 1
      %p94 = scmp.ne.s32.totalorder %s89, %s91
      %p95 = scmp.eq.s32.totalorder %s34, 0
      %p96 = por %p94, %p95
      %p97 = scmp.ne.s32.totalorder %s89, %s91
      %p98 = scmp.eq.s32.totalorder %s39, 1
      %p99 = por %p97, %p98
      %p100 = scmp.ne.s32.totalorder %s91, %s92
      %p101 = scmp.eq.s32.totalorder %s39, 0
      %p102 = por %p100, %p101
      %p103 = scmp.ne.s32.totalorder %s91, %s92
      %p104 = scmp.eq.s32.totalorder %s40, 1
      %p105 = por %p103, %p104
      %p107 = scmp.ne.s32.totalorder %s92, %s106
      %p108 = scmp.eq.s32.totalorder %s40, 0
      %p109 = por %p107, %p108
      %s111 = sadd.s32 %s110, 1
      %p114 = scmp.eq.s32.totalorder %s34, 1
      %p115 = scmp.ne.s32.totalorder %s110, %s112
      %p116 = scmp.eq.s32.totalorder %s34, 0
      %p117 = por %p115, %p116
      %p118 = scmp.ne.s32.totalorder %s110, %s112
      %p119 = scmp.eq.s32.totalorder %s39, 1
      %p120 = por %p118, %p119
      %p121 = scmp.ne.s32.totalorder %s112, %s113
      %p122 = scmp.eq.s32.totalorder %s39, 0
      %p123 = por %p121, %p122
      %p124 = scmp.ne.s32.totalorder %s112, %s113
      %p125 = scmp.eq.s32.totalorder %s40, 1
      %p126 = por %p124, %p125
      %p128 = scmp.ne.s32.totalorder %s113, %s127
      %p129 = scmp.eq.s32.totalorder %s40, 0
      %p130 = por %p128, %p129
      %s132 = sadd.s32 %s131, 1
      %p135 = scmp.eq.s32.totalorder %s34, 1
      %p136 = scmp.ne.s32.totalorder %s131, %s133
      %p137 = scmp.eq.s32.totalorder %s34, 0
      %p138 = por %p136, %p137
      %p139 = scmp.ne.s32.totalorder %s131, %s133
      %p140 = scmp.eq.s32.totalorder %s39, 1
      %p141 = por %p139, %p140
      %p142 = scmp.ne.s32.totalorder %s133, %s134
      %p143 = scmp.eq.s32.totalorder %s39, 0
      %p144 = por %p142, %p143
      %p145 = scmp.ne.s32.totalorder %s133, %s134
      %p146 = scmp.eq.s32.totalorder %s40, 1
      %p147 = por %p145, %p146
      %p149 = scmp.ne.s32.totalorder %s134, %s148
      %p150 = scmp.eq.s32.totalorder %s40, 0
      %p151 = por %p149, %p150
      %s153 = sadd.s32 %s152, 1
      %p156 = scmp.eq.s32.totalorder %s34, 1
      %p157 = scmp.ne.s32.totalorder %s152, %s154
      %p158 = scmp.eq.s32.totalorder %s34, 0
      %p159 = por %p157, %p158
      %p160 = scmp.ne.s32.totalorder %s152, %s154
      %p161 = scmp.eq.s32.totalorder %s39, 1
      %p162 = por %p160, %p161
      %p163 = scmp.ne.s32.totalorder %s154, %s155
      %p164 = scmp.eq.s32.totalorder %s39, 0
      %p165 = por %p163, %p164
      %p166 = scmp.ne.s32.totalorder %s154, %s155
      %p167 = scmp.eq.s32.totalorder %s40, 1
      %p168 = por %p166, %p167
      %p170 = scmp.ne.s32.totalorder %s155, %s169
      %p171 = scmp.eq.s32.totalorder %s40, 0
      %p172 = por %p170, %p171
      %s174 = sadd.s32 %s173, 1
      %p177 = scmp.eq.s32.totalorder %s34, 1
      %p178 = scmp.ne.s32.totalorder %s173, %s175
      %p179 = scmp.eq.s32.totalorder %s34, 0
      %p180 = por %p178, %p179
      %p181 = scmp.ne.s32.totalorder %s173, %s175
      %p182 = scmp.eq.s32.totalorder %s39, 1
      %p183 = por %p181, %p182
      %p184 = scmp.ne.s32.totalorder %s175, %s176
      %p185 = scmp.eq.s32.totalorder %s39, 0
      %p186 = por %p184, %p185
      %p187 = scmp.ne.s32.totalorder %s175, %s176
      %p188 = scmp.eq.s32.totalorder %s40, 1
      %p189 = por %p187, %p188
      %p191 = scmp.ne.s32.totalorder %s176, %s190
      %p192 = scmp.eq.s32.totalorder %s40, 0
      %p193 = por %p191, %p192
      %s195 = sadd.s32 %s194, 1
      %p198 = scmp.eq.s32.totalorder %s34, 1
      %p199 = scmp.ne.s32.totalorder %s194, %s196
      %p200 = scmp.eq.s32.totalorder %s34, 0
      %p201 = por %p199, %p200
      %p202 = scmp.ne.s32.totalorder %s194, %s196
      %p203 = scmp.eq.s32.totalorder %s39, 1
      %p204 = por %p202, %p203
      %p205 = scmp.ne.s32.totalorder %s196, %s197
      %p206 = scmp.eq.s32.totalorder %s39, 0
      %p207 = por %p205, %p206
      %p208 = scmp.ne.s32.totalorder %s196, %s197
      %p209 = scmp.eq.s32.totalorder %s40, 1
      %p210 = por %p208, %p209
      %p212 = scmp.ne.s32.totalorder %s197, %s211
      %p213 = scmp.eq.s32.totalorder %s40, 0
      %p214 = por %p212, %p213
      %s216 = sadd.s32 %s215, 1
      %p219 = scmp.eq.s32.totalorder %s34, 1
      %p220 = scmp.ne.s32.totalorder %s215, %s217
      %p221 = scmp.eq.s32.totalorder %s34, 0
      %p222 = por %p220, %p221
      %p223 = scmp.ne.s32.totalorder %s215, %s217
      %p224 = scmp.eq.s32.totalorder %s39, 1
      %p225 = por %p223, %p224
      %p226 = scmp.ne.s32.totalorder %s217, %s218
      %p227 = scmp.eq.s32.totalorder %s39, 0
      %p228 = por %p226, %p227
      %p229 = scmp.ne.s32.totalorder %s217, %s218
      %p230 = scmp.eq.s32.totalorder %s40, 1
      %p231 = por %p229, %p230
      %p233 = scmp.ne.s32.totalorder %s218, %s232
      %p234 = scmp.eq.s32.totalorder %s40, 0
      %p235 = por %p233, %p234
      %s237 = sadd.s32 %s236, 1
      %p240 = scmp.eq.s32.totalorder %s34, 1
      %p241 = scmp.ne.s32.totalorder %s236, %s238
      %p242 = scmp.eq.s32.totalorder %s34, 0
      %p243 = por %p241, %p242
      %p244 = scmp.ne.s32.totalorder %s236, %s238
      %p245 = scmp.eq.s32.totalorder %s39, 1
      %p246 = por %p244, %p245
      %p247 = scmp.ne.s32.totalorder %s238, %s239
      %p248 = scmp.eq.s32.totalorder %s39, 0
      %p249 = por %p247, %p248
      %p250 = scmp.ne.s32.totalorder %s238, %s239
      %p251 = scmp.eq.s32.totalorder %s40, 1
      %p252 = por %p250, %p251
      %p254 = scmp.ne.s32.totalorder %s239, %s253
      %p255 = scmp.eq.s32.totalorder %s40, 0
      %p256 = por %p254, %p255
      %s258 = sadd.s32 %s257, 1
      %p261 = scmp.eq.s32.totalorder %s34, 1
      %p262 = scmp.ne.s32.totalorder %s257, %s259
      %p263 = scmp.eq.s32.totalorder %s34, 0
      %p264 = por %p262, %p263
      %p265 = scmp.ne.s32.totalorder %s257, %s259
      %p266 = scmp.eq.s32.totalorder %s39, 1
      %p267 = por %p265, %p266
      %p268 = scmp.ne.s32.totalorder %s259, %s260
      %p269 = scmp.eq.s32.totalorder %s39, 0
      %p270 = por %p268, %p269
      %p271 = scmp.ne.s32.totalorder %s259, %s260
      %p272 = scmp.eq.s32.totalorder %s40, 1
      %p273 = por %p271, %p272
      %p275 = scmp.ne.s32.totalorder %s260, %s274
      %p276 = scmp.eq.s32.totalorder %s40, 0
      %p277 = por %p275, %p276
      %s279 = sadd.s32 %s278, 1
      %p282 = scmp.eq.s32.totalorder %s34, 1
      %p283 = scmp.ne.s32.totalorder %s278, %s280
      %p284 = scmp.eq.s32.totalorder %s34, 0
      %p285 = por %p283, %p284
      %p286 = scmp.ne.s32.totalorder %s278, %s280
      %p287 = scmp.eq.s32.totalorder %s39, 1
      %p288 = por %p286, %p287
      %p289 = scmp.ne.s32.totalorder %s280, %s281
      %p290 = scmp.eq.s32.totalorder %s39, 0
      %p291 = por %p289, %p290
      %p292 = scmp.ne.s32.totalorder %s280, %s281
      %p293 = scmp.eq.s32.totalorder %s40, 1
      %p294 = por %p292, %p293
      %p296 = scmp.ne.s32.totalorder %s281, %s295
      %p297 = scmp.eq.s32.totalorder %s40, 0
      %p298 = por %p296, %p297
      %s300 = sadd.s32 %s299, 1
      %p303 = scmp.eq.s32.totalorder %s34, 1
      %p304 = scmp.ne.s32.totalorder %s299, %s301
      %p305 = scmp.eq.s32.totalorder %s34, 0
      %p306 = por %p304, %p305
      %p307 = scmp.ne.s32.totalorder %s299, %s301
      %p308 = scmp.eq.s32.totalorder %s39, 1
      %p309 = por %p307, %p308
      %p310 = scmp.ne.s32.totalorder %s301, %s302
      %p311 = scmp.eq.s32.totalorder %s39, 0
      %p312 = por %p310, %p311
      %p313 = scmp.ne.s32.totalorder %s301, %s302
      %p314 = scmp.eq.s32.totalorder %s40, 1
      %p315 = por %p313, %p314
      %p317 = scmp.ne.s32.totalorder %s302, %s316
      %p318 = scmp.eq.s32.totalorder %s40, 0
      %p319 = por %p317, %p318
      %s320 = ssub.s32 %s34, %s41
      %p321 = scmp.eq.s32.totalorder %s320, 0
      %s323 = sadd.s32 %s322, 1
      %s324 = scalar_select %p321, %s322, %s323
      %p327 = pneg %p321
      %p328 = scmp.eq.s32.totalorder %s34, 1
      %p329 = por %p327, %p328
      %p330 = scmp.ne.s32.totalorder %s322, %s325
      %p331 = scmp.eq.s32.totalorder %s34, 0
      %p332 = por %p330, %p331
      %p333 = scmp.ne.s32.totalorder %s322, %s325
      %p334 = scmp.eq.s32.totalorder %s39, 1
      %p335 = por %p333, %p334
      %p336 = scmp.ne.s32.totalorder %s325, %s326
      %p337 = scmp.eq.s32.totalorder %s39, 0
      %p338 = por %p336, %p337
      %p339 = scmp.ne.s32.totalorder %s325, %s326
      %p340 = scmp.eq.s32.totalorder %s40, 1
      %p341 = por %p339, %p340
      %p343 = scmp.ne.s32.totalorder %s326, %s342
      %p344 = scmp.eq.s32.totalorder %s40, 0
      %p345 = por %p343, %p344
      %s346 = ssub.s32 %s34, %s41
      %p347 = scmp.eq.s32.totalorder %s346, 0
      %s349 = sadd.s32 %s348, 1
      %s350 = scalar_select %p347, %s348, %s349
      %p353 = pneg %p347
      %p354 = scmp.eq.s32.totalorder %s34, 1
      %p355 = por %p353, %p354
      %p356 = scmp.ne.s32.totalorder %s348, %s351
      %p357 = scmp.eq.s32.totalorder %s34, 0
      %p358 = por %p356, %p357
      %p359 = scmp.ne.s32.totalorder %s348, %s351
      %p360 = scmp.eq.s32.totalorder %s39, 1
      %p361 = por %p359, %p360
      %p362 = scmp.ne.s32.totalorder %s351, %s352
      %p363 = scmp.eq.s32.totalorder %s39, 0
      %p364 = por %p362, %p363
      %p365 = scmp.ne.s32.totalorder %s351, %s352
      %p366 = scmp.eq.s32.totalorder %s40, 1
      %p367 = por %p365, %p366
      %p369 = scmp.ne.s32.totalorder %s352, %s368
      %p370 = scmp.eq.s32.totalorder %s40, 0
      %p371 = por %p369, %p370
      %p372 = scmp.le.s32.totalorder 1, %s34
      %p373 = scmp.lt.s32.totalorder %s34, 3
      %p374 = pnand %p372, %p373
      %p375 = pneg %p374
      // Predicated region
      $region9: #{tpu_custom_call.1} parent=5 // pred_check
        _
      $region10: #{tpu_custom_call.1} parent=5 // pred_check_branch
        %377 = sbr.rel (%p374) target = $region12
      $region11: #{tpu_custom_call.1} parent=5 // pred_region
        %s378 = ssub.s32 %s34, 1
        // Predicated region
        $region13: #{tpu_custom_call.1} parent=11 // pred_check
          %p379 = pneg %p81
        $region14: #{tpu_custom_call.1} parent=11 // pred_check_branch
          %381 = sbr.rel (%p379) target = $region16
        $region15: #{tpu_custom_call.1} parent=11 // pred_region
          %383 = vsyncadd [#allocation6], 0
          %s384 = sshll.u32 %s1, 4
          %s385 = int_to_ptr.hbm [resolvable:$true] %s384
          %s386 = sshll.u32 [#allocation5], 4
          %s387 = int_to_ptr.vmem [resolvable:$true] %s386
          %392 = dma.hbm_to_vmem [thread:$0]  %s385, 2048, %s387, [#allocation6], 64, 64, 4
        $region16: #{tpu_custom_call.1} parent=11 // pred_fallthru
          _
        // Predicated region
        $region17: #{tpu_custom_call.1} parent=11 // pred_check
          %p393 = pneg %p102
        $region18: #{tpu_custom_call.1} parent=11 // pred_check_branch
          %395 = sbr.rel (%p393) target = $region20
        $region19: #{tpu_custom_call.1} parent=11 // pred_region
          _
        $region20: #{tpu_custom_call.1} parent=11 // pred_fallthru
          _
        // Predicated region
        $region21: #{tpu_custom_call.1} parent=11 // pred_check
          %p396 = pneg %p123
        $region22: #{tpu_custom_call.1} parent=11 // pred_check_branch
          %398 = sbr.rel (%p396) target = $region24
        $region23: #{tpu_custom_call.1} parent=11 // pred_region
          %400 = vsyncadd [#allocation6], 0
          %s401 = sshll.u32 %s3, 4
          %s402 = int_to_ptr.hbm [resolvable:$true] %s401
          %s403 = sshll.u32 [#allocation7], 4
          %s404 = int_to_ptr.vmem [resolvable:$true] %s403
          %409 = dma.hbm_to_vmem [thread:$0]  %s402, 1024, %s404, [#allocation6], 64, 64, 4
        $region24: #{tpu_custom_call.1} parent=11 // pred_fallthru
          _
        // Predicated region
        $region25: #{tpu_custom_call.1} parent=11 // pred_check
          %p410 = pneg %p144
        $region26: #{tpu_custom_call.1} parent=11 // pred_check_branch
          %412 = sbr.rel (%p410) target = $region28
        $region27: #{tpu_custom_call.1} parent=11 // pred_region
          %414 = vsyncadd [#allocation9], 0
          %s416 = sshll.u32 %s4, 4
          %s417 = int_to_ptr.hbm [resolvable:$true] %s416
          %s418 = sshll.u32 [#allocation8], 4
          %s419 = int_to_ptr.vmem [resolvable:$true] %s418
          %421 = dma.hbm_to_vmem [thread:$0]  %s417, 16, %s419, [#allocation9]
        $region28: #{tpu_custom_call.1} parent=11 // pred_fallthru
          _
        // Predicated region
        $region29: #{tpu_custom_call.1} parent=11 // pred_check
          %p422 = pneg %p165
        $region30: #{tpu_custom_call.1} parent=11 // pred_check_branch
          %424 = sbr.rel (%p422) target = $region32
        $region31: #{tpu_custom_call.1} parent=11 // pred_region
          %426 = vsyncadd [#allocation9], 0
          %s427 = sshll.u32 %s5, 4
          %s428 = int_to_ptr.hbm [resolvable:$true] %s427
          %s429 = sshll.u32 [#allocation10], 4
          %s430 = int_to_ptr.vmem [resolvable:$true] %s429
          %435 = dma.hbm_to_vmem [thread:$0]  %s428, 1024, %s430, [#allocation9], 64, 64, 4
        $region32: #{tpu_custom_call.1} parent=11 // pred_fallthru
          _
        // Predicated region
        $region33: #{tpu_custom_call.1} parent=11 // pred_check
          %p436 = pneg %p186
        $region34: #{tpu_custom_call.1} parent=11 // pred_check_branch
          %438 = sbr.rel (%p436) target = $region36
        $region35: #{tpu_custom_call.1} parent=11 // pred_region
          _
        $region36: #{tpu_custom_call.1} parent=11 // pred_fallthru
          _
        // Predicated region
        $region37: #{tpu_custom_call.1} parent=11 // pred_check
          %p439 = pneg %p207
        $region38: #{tpu_custom_call.1} parent=11 // pred_check_branch
          %441 = sbr.rel (%p439) target = $region40
        $region39: #{tpu_custom_call.1} parent=11 // pred_region
          %443 = vsyncadd [#allocation12], 0
          %s444 = sshll.u32 %s7, 4
          %s445 = int_to_ptr.hbm [resolvable:$true] %s444
          %s446 = sshll.u32 [#allocation11], 4
          %s447 = int_to_ptr.vmem [resolvable:$true] %s446
          %452 = dma.hbm_to_vmem [thread:$0]  %s445, 1024, %s447, [#allocation12], 64, 64, 4
        $region40: #{tpu_custom_call.1} parent=11 // pred_fallthru
          _
        // Predicated region
        $region41: #{tpu_custom_call.1} parent=11 // pred_check
          %p453 = pneg %p228
        $region42: #{tpu_custom_call.1} parent=11 // pred_check_branch
          %455 = sbr.rel (%p453) target = $region44
        $region43: #{tpu_custom_call.1} parent=11 // pred_region
          _
        $region44: #{tpu_custom_call.1} parent=11 // pred_fallthru
          _
        // Predicated region
        $region45: #{tpu_custom_call.1} parent=11 // pred_check
          %p456 = pneg %p249
        $region46: #{tpu_custom_call.1} parent=11 // pred_check_branch
          %458 = sbr.rel (%p456) target = $region48
        $region47: #{tpu_custom_call.1} parent=11 // pred_region
          %460 = vsyncadd [#allocation12], 0
          %s461 = sshll.u32 %s9, 4
          %s462 = int_to_ptr.hbm [resolvable:$true] %s461
          %s463 = sshll.u32 [#allocation13], 4
          %s464 = int_to_ptr.vmem [resolvable:$true] %s463
          %469 = dma.hbm_to_vmem [thread:$0]  %s462, 1024, %s464, [#allocation12], 64, 64, 4
        $region48: #{tpu_custom_call.1} parent=11 // pred_fallthru
          _
        // Predicated region
        $region49: #{tpu_custom_call.1} parent=11 // pred_check
          %p470 = pneg %p270
        $region50: #{tpu_custom_call.1} parent=11 // pred_check_branch
          %472 = sbr.rel (%p470) target = $region52
        $region51: #{tpu_custom_call.1} parent=11 // pred_region
          _
        $region52: #{tpu_custom_call.1} parent=11 // pred_fallthru
          _
        // Predicated region
        $region53: #{tpu_custom_call.1} parent=11 // pred_check
          %p473 = pneg %p291
        $region54: #{tpu_custom_call.1} parent=11 // pred_check_branch
          %475 = sbr.rel (%p473) target = $region56
        $region55: #{tpu_custom_call.1} parent=11 // pred_region
          %477 = vsyncadd [#allocation15], 0
          %s478 = sshll.u32 %s11, 4
          %s479 = int_to_ptr.hbm [resolvable:$true] %s478
          %s480 = sshll.u32 [#allocation14], 4
          %s481 = int_to_ptr.vmem [resolvable:$true] %s480
          %486 = dma.hbm_to_vmem [thread:$0]  %s479, 2048, %s481, [#allocation15], 128, 128, 8
        $region56: #{tpu_custom_call.1} parent=11 // pred_fallthru
          _
        // Predicated region
        $region57: #{tpu_custom_call.1} parent=11 // pred_check
          %p487 = pneg %p312
        $region58: #{tpu_custom_call.1} parent=11 // pred_check_branch
          %489 = sbr.rel (%p487) target = $region60
        $region59: #{tpu_custom_call.1} parent=11 // pred_region
          _
        $region60: #{tpu_custom_call.1} parent=11 // pred_fallthru
          _
      $region12: #{tpu_custom_call.1} parent=5 // pred_fallthru
        _
      %p490 = scmp.lt.s32.totalorder %s34, 2
      // Predicated region
      $region61: #{tpu_custom_call.1} parent=5 // pred_check
        %p491 = pneg %p490
      $region62: #{tpu_custom_call.1} parent=5 // pred_check_branch
        %493 = sbr.rel (%p491) target = $region64
      $region63: #{tpu_custom_call.1} parent=5 // pred_region
        // Predicated region
        $region65: #{tpu_custom_call.1} parent=63 // pred_check
          %p494 = pneg %p54
        $region66: #{tpu_custom_call.1} parent=63 // pred_check_branch
          %496 = sbr.rel (%p494) target = $region68
        $region67: #{tpu_custom_call.1} parent=63 // pred_region
          %s497 = sand.u32 %s44, 1
          %s498 = scalar_lea.sflag [#allocation3], %s497
          %s499 = sand.u32 %s44, 1
          %s500 = smul.addr %s499, 128
          %s501 = scalar_lea.vmem [#allocation2], %s500
          %s502 = smul.u32 16, %s34
          %504 = vsyncadd %s498, 0
          %s505 = smul.addr %s502, 2
          %s506 = smul.addr %s505, 4
          %s507 = scalar_lea.hbm %s0, %s506
          %s508 = sshll.u32 %s507, 4
          %s509 = int_to_ptr.hbm [resolvable:$true] %s508
          %s510 = sshll.u32 %s501, 4
          %s511 = int_to_ptr.vmem [resolvable:$true] %s510
          %516 = dma.hbm_to_vmem [thread:$0]  %s509, 2048, %s511, %s498, 128, 128, 8
        $region68: #{tpu_custom_call.1} parent=63 // pred_fallthru
          _
      $region64: #{tpu_custom_call.1} parent=5 // pred_fallthru
        _
      %p517 = scmp.le.s32.totalorder 1, %s34
      %p518 = scmp.lt.s32.totalorder %s34, 3
      %p519 = pnand %p517, %p518
      %p520 = pneg %p519
      // Predicated region
      $region69: #{tpu_custom_call.1} parent=5 // pred_check
        _
      $region70: #{tpu_custom_call.1} parent=5 // pred_check_branch
        %522 = sbr.rel (%p519) target = $region72
      $region71: #{tpu_custom_call.1} parent=5 // pred_region
        %s523 = ssub.s32 %s34, 1
        %s524 = sand.u32 %s47, 1
        %s525 = scalar_lea.sflag [#allocation3], %s524
        %s526 = sand.u32 %s47, 1
        %s527 = smul.addr %s526, 128
        %s528 = scalar_lea.vmem [#allocation2], %s527
        // Predicated region
        $region73: #{tpu_custom_call.1} parent=71 // pred_check
          %p529 = pneg %p60
        $region74: #{tpu_custom_call.1} parent=71 // pred_check_branch
          %531 = sbr.rel (%p529) target = $region76
        $region75: #{tpu_custom_call.1} parent=71 // pred_region
          %533 = dma.done %s525, 2048
        $region76: #{tpu_custom_call.1} parent=71 // pred_fallthru
          _
        // Predicated region
        $region77: #{tpu_custom_call.1} parent=71 // pred_check
          %p534 = pneg %p81
        $region78: #{tpu_custom_call.1} parent=71 // pred_check_branch
          %536 = sbr.rel (%p534) target = $region80
        $region79: #{tpu_custom_call.1} parent=71 // pred_region
          %538 = dma.done [#allocation6], 2048
        $region80: #{tpu_custom_call.1} parent=71 // pred_fallthru
          _
        // Predicated region
        $region81: #{tpu_custom_call.1} parent=71 // pred_check
          %p539 = pneg %p123
        $region82: #{tpu_custom_call.1} parent=71 // pred_check_branch
          %541 = sbr.rel (%p539) target = $region84
        $region83: #{tpu_custom_call.1} parent=71 // pred_region
          %543 = dma.done [#allocation6], 1024
        $region84: #{tpu_custom_call.1} parent=71 // pred_fallthru
          _
        // Predicated region
        $region85: #{tpu_custom_call.1} parent=71 // pred_check
          %p544 = pneg %p144
        $region86: #{tpu_custom_call.1} parent=71 // pred_check_branch
          %546 = sbr.rel (%p544) target = $region88
        $region87: #{tpu_custom_call.1} parent=71 // pred_region
          %548 = dma.done [#allocation9], 16
        $region88: #{tpu_custom_call.1} parent=71 // pred_fallthru
          _
        // Predicated region
        $region89: #{tpu_custom_call.1} parent=71 // pred_check
          %p549 = pneg %p165
        $region90: #{tpu_custom_call.1} parent=71 // pred_check_branch
          %551 = sbr.rel (%p549) target = $region92
        $region91: #{tpu_custom_call.1} parent=71 // pred_region
          %553 = dma.done [#allocation9], 1024
        $region92: #{tpu_custom_call.1} parent=71 // pred_fallthru
          _
        // Predicated region
        $region93: #{tpu_custom_call.1} parent=71 // pred_check
          %p554 = pneg %p207
        $region94: #{tpu_custom_call.1} parent=71 // pred_check_branch
          %556 = sbr.rel (%p554) target = $region96
        $region95: #{tpu_custom_call.1} parent=71 // pred_region
          %558 = dma.done [#allocation12], 1024
        $region96: #{tpu_custom_call.1} parent=71 // pred_fallthru
          _
        // Predicated region
        $region97: #{tpu_custom_call.1} parent=71 // pred_check
          %p559 = pneg %p249
        $region98: #{tpu_custom_call.1} parent=71 // pred_check_branch
          %561 = sbr.rel (%p559) target = $region100
        $region99: #{tpu_custom_call.1} parent=71 // pred_region
          %563 = dma.done [#allocation12], 1024
        $region100: #{tpu_custom_call.1} parent=71 // pred_fallthru
          _
        // Predicated region
        $region101: #{tpu_custom_call.1} parent=71 // pred_check
          %p564 = pneg %p291
        $region102: #{tpu_custom_call.1} parent=71 // pred_check_branch
          %566 = sbr.rel (%p564) target = $region104
        $region103: #{tpu_custom_call.1} parent=71 // pred_region
          %568 = dma.done [#allocation15], 2048
        $region104: #{tpu_custom_call.1} parent=71 // pred_fallthru
          _
        %s569 = sand.u32 %s47, 1
        %s570 = scalar_lea.sflag [#allocation3], %s569
        %s571 = sand.u32 %s47, 1
        %s572 = smul.addr %s571, 128
        %s573 = scalar_lea.vmem [#allocation2], %s572
        %p574 = pneg %p60
        %p575 = pneg %p57
        %p576 = pneg %p81
        %p577 = pneg %p78
        %p578 = pneg %p102
        %p579 = pneg %p99
        %p580 = pneg %p123
        %p581 = pneg %p120
        %p582 = pneg %p144
        %p583 = pneg %p141
        %p584 = pneg %p165
        %p585 = pneg %p162
        %p586 = pneg %p186
        %p587 = pneg %p183
        %p588 = pneg %p207
        %p589 = pneg %p204
        %p590 = pneg %p228
        %p591 = pneg %p225
        %p592 = pneg %p249
        %p593 = pneg %p246
        %p594 = pneg %p270
        %p595 = pneg %p267
        %p596 = pneg %p291
        %p597 = pneg %p288
        %p598 = pneg %p312
        %p599 = pneg %p309
        %p600 = pneg %p338
        %p601 = pneg %p335
        %s602 = sand.u32 %s325, 1
        %s603 = scalar_lea.sflag [#allocation4], %s602
        %s604 = sand.u32 %s325, 1
        %s605 = smul.addr %s604, 128
        %s606 = scalar_lea.vmem [#allocation16], %s605
        %p607 = pneg %p364
        %p608 = pneg %p361
        %s609 = sand.u32 %s351, 1
        %s610 = scalar_lea.sflag [#allocation18], %s609
        %s611 = sand.u32 %s351, 1
        %s612 = smul.addr %s611, 256
        %s613 = scalar_lea.vmem [#allocation17], %s612
        %s614 = smul.u32 16, %s39
        %s615 = smul.u32 16, %s39
        %s616 = smul.u32 16, %s39
        %v617 = vld [vmem:[%s528] sm:$0xff]
        %v618 = vld [vmem:[%s528 + $0x8] sm:$0xff]
        %v619 = vld [vmem:[%s528 + $0x10] sm:$0xff]
        %v620 = vld [vmem:[%s528 + $0x18] sm:$0xff]
        %v621 = vld [vmem:[%s528 + $0x20] sm:$0xff]
        %v622 = vld [vmem:[%s528 + $0x28] sm:$0xff]
        %v623 = vld [vmem:[%s528 + $0x30] sm:$0xff]
        %v624 = vld [vmem:[%s528 + $0x38] sm:$0xff]
        %v625 = vld [vmem:[%s528 + $0x40] sm:$0xff]
        %v626 = vld [vmem:[%s528 + $0x48] sm:$0xff]
        %v627 = vld [vmem:[%s528 + $0x50] sm:$0xff]
        %v628 = vld [vmem:[%s528 + $0x58] sm:$0xff]
        %v629 = vld [vmem:[%s528 + $0x60] sm:$0xff]
        %v630 = vld [vmem:[%s528 + $0x68] sm:$0xff]
        %v631 = vld [vmem:[%s528 + $0x70] sm:$0xff]
        %v632 = vld [vmem:[%s528 + $0x78] sm:$0xff]
        %v633 = vld [vmem:[#allocation5] sm:$0xf]
        %v634 = vld [vmem:[#allocation5 + $0x4] sm:$0xf]
        %v635 = vld [vmem:[#allocation5 + $0x8] sm:$0xf]
        %v636 = vld [vmem:[#allocation5 + $0xc] sm:$0xf]
        %v637 = vld [vmem:[#allocation5 + $0x10] sm:$0xf]
        %v638 = vld [vmem:[#allocation5 + $0x14] sm:$0xf]
        %v639 = vld [vmem:[#allocation5 + $0x18] sm:$0xf]
        %v640 = vld [vmem:[#allocation5 + $0x1c] sm:$0xf]
        %v641 = vld [vmem:[#allocation5 + $0x20] sm:$0xf]
        %v642 = vld [vmem:[#allocation5 + $0x24] sm:$0xf]
        %v643 = vld [vmem:[#allocation5 + $0x28] sm:$0xf]
        %v644 = vld [vmem:[#allocation5 + $0x2c] sm:$0xf]
        %v645 = vld [vmem:[#allocation5 + $0x30] sm:$0xf]
        %v646 = vld [vmem:[#allocation5 + $0x34] sm:$0xf]
        %v647 = vld [vmem:[#allocation5 + $0x38] sm:$0xf]
        %v648 = vld [vmem:[#allocation5 + $0x3c] sm:$0xf]
        %v649 = vld [vmem:[#allocation5 + $0x40] sm:$0xf]
        %v650 = vld [vmem:[#allocation5 + $0x44] sm:$0xf]
        %v651 = vld [vmem:[#allocation5 + $0x48] sm:$0xf]
        %v652 = vld [vmem:[#allocation5 + $0x4c] sm:$0xf]
        %v653 = vld [vmem:[#allocation5 + $0x50] sm:$0xf]
        %v654 = vld [vmem:[#allocation5 + $0x54] sm:$0xf]
        %v655 = vld [vmem:[#allocation5 + $0x58] sm:$0xf]
        %v656 = vld [vmem:[#allocation5 + $0x5c] sm:$0xf]
        %v657 = vld [vmem:[#allocation5 + $0x60] sm:$0xf]
        %v658 = vld [vmem:[#allocation5 + $0x64] sm:$0xf]
        %v659 = vld [vmem:[#allocation5 + $0x68] sm:$0xf]
        %v660 = vld [vmem:[#allocation5 + $0x6c] sm:$0xf]
        %v661 = vld [vmem:[#allocation5 + $0x70] sm:$0xf]
        %v662 = vld [vmem:[#allocation5 + $0x74] sm:$0xf]
        %v663 = vld [vmem:[#allocation5 + $0x78] sm:$0xf]
        %v664 = vld [vmem:[#allocation5 + $0x7c] sm:$0xf]
        %v665 = vld [vmem:[%s2] sm:$0x1]
        %v667 = vperm.slane %v665, 0
        %v685 = vunpack.c.l.b16 %v617
        %v686 = vunpack.c.h.b16 %v617
        %v687 = vunpack.c.l.b16 %v618
        %v688 = vunpack.c.h.b16 %v618
        %v689 = vunpack.c.l.b16 %v619
        %v690 = vunpack.c.h.b16 %v619
        %v691 = vunpack.c.l.b16 %v620
        %v692 = vunpack.c.h.b16 %v620
        %v693 = vunpack.c.l.b16 %v621
        %v694 = vunpack.c.h.b16 %v621
        %v695 = vunpack.c.l.b16 %v622
        %v696 = vunpack.c.h.b16 %v622
        %v697 = vunpack.c.l.b16 %v623
        %v698 = vunpack.c.h.b16 %v623
        %v699 = vunpack.c.l.b16 %v624
        %v700 = vunpack.c.h.b16 %v624
        %v701 = vunpack.c.l.b16 %v625
        %v702 = vunpack.c.h.b16 %v625
        %v703 = vunpack.c.l.b16 %v626
        %v704 = vunpack.c.h.b16 %v626
        %v705 = vunpack.c.l.b16 %v627
        %v706 = vunpack.c.h.b16 %v627
        %v707 = vunpack.c.l.b16 %v628
        %v708 = vunpack.c.h.b16 %v628
        %v709 = vunpack.c.l.b16 %v629
        %v710 = vunpack.c.h.b16 %v629
        %v711 = vunpack.c.l.b16 %v630
        %v712 = vunpack.c.h.b16 %v630
        %v713 = vunpack.c.l.b16 %v631
        %v714 = vunpack.c.h.b16 %v631
        %v715 = vunpack.c.l.b16 %v632
        %v716 = vunpack.c.h.b16 %v632
        %v717 = vpack.c.b16 %v687, %v685
        %v718 = vpack.c.b16 %v688, %v686
        %v719 = vpack.c.b16 %v691, %v689
        %v720 = vpack.c.b16 %v692, %v690
        %v721 = vpack.c.b16 %v695, %v693
        %v722 = vpack.c.b16 %v696, %v694
        %v723 = vpack.c.b16 %v699, %v697
        %v724 = vpack.c.b16 %v700, %v698
        %v725 = vpack.c.b16 %v703, %v701
        %v726 = vpack.c.b16 %v704, %v702
        %v727 = vpack.c.b16 %v707, %v705
        %v728 = vpack.c.b16 %v708, %v706
        %v729 = vpack.c.b16 %v711, %v709
        %v730 = vpack.c.b16 %v712, %v710
        %v731 = vpack.c.b16 %v715, %v713
        %v732 = vpack.c.b16 %v716, %v714
        %v781 = vunpack.c.l.b16 %v633
        %v782 = vunpack.c.l.b16 %v634
        %v783 = vunpack.c.l.b16 %v635
        %v784 = vunpack.c.l.b16 %v636
        %v785 = vunpack.c.l.b16 %v637
        %v786 = vunpack.c.l.b16 %v638
        %v787 = vunpack.c.l.b16 %v639
        %v788 = vunpack.c.l.b16 %v640
        %v789 = vunpack.c.l.b16 %v641
        %v790 = vunpack.c.l.b16 %v642
        %v791 = vunpack.c.l.b16 %v643
        %v792 = vunpack.c.l.b16 %v644
        %v793 = vunpack.c.l.b16 %v645
        %v794 = vunpack.c.l.b16 %v646
        %v795 = vunpack.c.l.b16 %v647
        %v796 = vunpack.c.l.b16 %v648
        %v797 = vunpack.c.l.b16 %v649
        %v798 = vunpack.c.l.b16 %v650
        %v799 = vunpack.c.l.b16 %v651
        %v800 = vunpack.c.l.b16 %v652
        %v801 = vunpack.c.l.b16 %v653
        %v802 = vunpack.c.l.b16 %v654
        %v803 = vunpack.c.l.b16 %v655
        %v804 = vunpack.c.l.b16 %v656
        %v805 = vunpack.c.l.b16 %v657
        %v806 = vunpack.c.l.b16 %v658
        %v807 = vunpack.c.l.b16 %v659
        %v808 = vunpack.c.l.b16 %v660
        %v809 = vunpack.c.l.b16 %v661
        %v810 = vunpack.c.l.b16 %v662
        %v811 = vunpack.c.l.b16 %v663
        %v812 = vunpack.c.l.b16 %v664
        %v813 = vpack.c.b16 %v782, %v781
        %v814 = vpack.c.b16 %v784, %v783
        %v815 = vpack.c.b16 %v786, %v785
        %v816 = vpack.c.b16 %v788, %v787
        %v817 = vpack.c.b16 %v790, %v789
        %v818 = vpack.c.b16 %v792, %v791
        %v819 = vpack.c.b16 %v794, %v793
        %v820 = vpack.c.b16 %v796, %v795
        %v821 = vpack.c.b16 %v798, %v797
        %v822 = vpack.c.b16 %v800, %v799
        %v823 = vpack.c.b16 %v802, %v801
        %v824 = vpack.c.b16 %v804, %v803
        %v825 = vpack.c.b16 %v806, %v805
        %v826 = vpack.c.b16 %v808, %v807
        %v827 = vpack.c.b16 %v810, %v809
        %v828 = vpack.c.b16 %v812, %v811
        %845 = vmatpush.bf16.msra.mxu0 %v820
        %846 = vmatpush.bf16.msra.mxu0 %v819
        %847 = vmatpush.bf16.msra.mxu0 %v818
        %848 = vmatpush.bf16.msra.mxu0 %v817
        %849 = vmatpush.bf16.msra.mxu0 %v816
        %850 = vmatpush.bf16.msra.mxu0 %v815
        %851 = vmatpush.bf16.msra.mxu0 %v814
        %852 = vmatpush.bf16.msra.mxu0 %v813
        %853 = vmatmul.bf16.gmra.mxu0 %v717
        %v854 = vpop.f32.mrf.mxu0
        %v855 = vadd.f32 %v667, %v854
        %v856 = vpop.f32.mrf.mxu0
        %v857 = vadd.f32 %v667, %v856
        %858 = vmatmul.bf16.gmra.mxu0 %v719
        %v859 = vpop.f32.mrf.mxu0
        %v860 = vadd.f32 %v667, %v859
        %v861 = vpop.f32.mrf.mxu0
        %v862 = vadd.f32 %v667, %v861
        %863 = vmatmul.bf16.gmra.mxu0 %v721
        %v864 = vpop.f32.mrf.mxu0
        %v865 = vadd.f32 %v667, %v864
        %v866 = vpop.f32.mrf.mxu0
        %v867 = vadd.f32 %v667, %v866
        %868 = vmatmul.bf16.gmra.mxu0 %v723
        %v869 = vpop.f32.mrf.mxu0
        %v870 = vadd.f32 %v667, %v869
        %v871 = vpop.f32.mrf.mxu0
        %v872 = vadd.f32 %v667, %v871
        %873 = vmatmul.bf16.gmra.mxu0 %v725
        %v874 = vpop.f32.mrf.mxu0
        %v875 = vadd.f32 %v667, %v874
        %v876 = vpop.f32.mrf.mxu0
        %v877 = vadd.f32 %v667, %v876
        %878 = vmatmul.bf16.gmra.mxu0 %v727
        %v879 = vpop.f32.mrf.mxu0
        %v880 = vadd.f32 %v667, %v879
        %v881 = vpop.f32.mrf.mxu0
        %v882 = vadd.f32 %v667, %v881
        %883 = vmatmul.bf16.gmra.mxu0 %v729
        %v884 = vpop.f32.mrf.mxu0
        %v885 = vadd.f32 %v667, %v884
        %v886 = vpop.f32.mrf.mxu0
        %v887 = vadd.f32 %v667, %v886
        %888 = vmatmul.bf16.gmra.mxu0 %v731
        %v889 = vpop.f32.mrf.mxu0
        %v890 = vadd.f32 %v667, %v889
        %v891 = vpop.f32.mrf.mxu0
        %v892 = vadd.f32 %v667, %v891
        %893 = vdwg.mxu0
        %894 = vmatpush.bf16.msra.mxu0 %v828
        %895 = vmatpush.bf16.msra.mxu0 %v827
        %896 = vmatpush.bf16.msra.mxu0 %v826
        %897 = vmatpush.bf16.msra.mxu0 %v825
        %898 = vmatpush.bf16.msra.mxu0 %v824
        %899 = vmatpush.bf16.msra.mxu0 %v823
        %900 = vmatpush.bf16.msra.mxu0 %v822
        %901 = vmatpush.bf16.msra.mxu0 %v821
        %902 = vmatmul.bf16.gmra.mxu0 %v718
        %v903 = vpop.f32.mrf.mxu0
        %v904 = vadd.f32 %v855, %v903
        %v905 = vpop.f32.mrf.mxu0
        %v906 = vadd.f32 %v857, %v905
        %907 = vmatmul.bf16.gmra.mxu0 %v720
        %v908 = vpop.f32.mrf.mxu0
        %v909 = vadd.f32 %v860, %v908
        %v910 = vpop.f32.mrf.mxu0
        %v911 = vadd.f32 %v862, %v910
        %912 = vmatmul.bf16.gmra.mxu0 %v722
        %v913 = vpop.f32.mrf.mxu0
        %v914 = vadd.f32 %v865, %v913
        %v915 = vpop.f32.mrf.mxu0
        %v916 = vadd.f32 %v867, %v915
        %917 = vmatmul.bf16.gmra.mxu0 %v724
        %v918 = vpop.f32.mrf.mxu0
        %v919 = vadd.f32 %v870, %v918
        %v920 = vpop.f32.mrf.mxu0
        %v921 = vadd.f32 %v872, %v920
        %922 = vmatmul.bf16.gmra.mxu0 %v726
        %v923 = vpop.f32.mrf.mxu0
        %v924 = vadd.f32 %v875, %v923
        %v925 = vpop.f32.mrf.mxu0
        %v926 = vadd.f32 %v877, %v925
        %927 = vmatmul.bf16.gmra.mxu0 %v728
        %v928 = vpop.f32.mrf.mxu0
        %v929 = vadd.f32 %v880, %v928
        %v930 = vpop.f32.mrf.mxu0
        %v931 = vadd.f32 %v882, %v930
        %932 = vmatmul.bf16.gmra.mxu0 %v730
        %v933 = vpop.f32.mrf.mxu0
        %v934 = vadd.f32 %v885, %v933
        %v935 = vpop.f32.mrf.mxu0
        %v936 = vadd.f32 %v887, %v935
        %937 = vmatmul.bf16.gmra.mxu0 %v732
        %v938 = vpop.f32.mrf.mxu0
        %v939 = vadd.f32 %v890, %v938
        %v940 = vpop.f32.mrf.mxu0
        %v941 = vadd.f32 %v892, %v940
        %942 = vdwg.mxu0
        %vm943 = vcmp.gt.f32.partialorder %v904, 0.0
        %vm944 = vcmp.gt.f32.partialorder %v906, 0.0
        %vm945 = vcmp.gt.f32.partialorder %v909, 0.0
        %vm946 = vcmp.gt.f32.partialorder %v911, 0.0
        %vm947 = vcmp.gt.f32.partialorder %v914, 0.0
        %vm948 = vcmp.gt.f32.partialorder %v916, 0.0
        %vm949 = vcmp.gt.f32.partialorder %v919, 0.0
        %vm950 = vcmp.gt.f32.partialorder %v921, 0.0
        %vm951 = vcmp.gt.f32.partialorder %v924, 0.0
        %vm952 = vcmp.gt.f32.partialorder %v926, 0.0
        %vm953 = vcmp.gt.f32.partialorder %v929, 0.0
        %vm954 = vcmp.gt.f32.partialorder %v931, 0.0
        %vm955 = vcmp.gt.f32.partialorder %v934, 0.0
        %vm956 = vcmp.gt.f32.partialorder %v936, 0.0
        %vm957 = vcmp.gt.f32.partialorder %v939, 0.0
        %vm958 = vcmp.gt.f32.partialorder %v941, 0.0
        %v959 = vmul.f32 %v904, 0.1
        %v960 = vmul.f32 %v906, 0.1
        %v961 = vmul.f32 %v909, 0.1
        %v962 = vmul.f32 %v911, 0.1
        %v963 = vmul.f32 %v914, 0.1
        %v964 = vmul.f32 %v916, 0.1
        %v965 = vmul.f32 %v919, 0.1
        %v966 = vmul.f32 %v921, 0.1
        %v967 = vmul.f32 %v924, 0.1
        %v968 = vmul.f32 %v926, 0.1
        %v969 = vmul.f32 %v929, 0.1
        %v970 = vmul.f32 %v931, 0.1
        %v971 = vmul.f32 %v934, 0.1
        %v972 = vmul.f32 %v936, 0.1
        %v973 = vmul.f32 %v939, 0.1
        %v974 = vmul.f32 %v941, 0.1
        %v975 = vsel %vm943, %v904, %v959
        %v976 = vsel %vm944, %v906, %v960
        %v977 = vsel %vm945, %v909, %v961
        %v978 = vsel %vm946, %v911, %v962
        %v979 = vsel %vm947, %v914, %v963
        %v980 = vsel %vm948, %v916, %v964
        %v981 = vsel %vm949, %v919, %v965
        %v982 = vsel %vm950, %v921, %v966
        %v983 = vsel %vm951, %v924, %v967
        %v984 = vsel %vm952, %v926, %v968
        %v985 = vsel %vm953, %v929, %v969
        %v986 = vsel %vm954, %v931, %v970
        %v987 = vsel %vm955, %v934, %v971
        %v988 = vsel %vm956, %v936, %v972
        %v989 = vsel %vm957, %v939, %v973
        %v990 = vsel %vm958, %v941, %v974
        %v991 = vpack.c.bf16 %v976, %v975
        %v992 = vpack.c.bf16 %v978, %v977
        %v993 = vpack.c.bf16 %v980, %v979
        %v994 = vpack.c.bf16 %v982, %v981
        %v995 = vpack.c.bf16 %v984, %v983
        %v996 = vpack.c.bf16 %v986, %v985
        %v997 = vpack.c.bf16 %v988, %v987
        %v998 = vpack.c.bf16 %v990, %v989
        %v999 = vld [vmem:[#allocation7] sm:$0xf]
        %v1000 = vld [vmem:[#allocation7 + $0x4] sm:$0xf]
        %v1001 = vld [vmem:[#allocation7 + $0x8] sm:$0xf]
        %v1002 = vld [vmem:[#allocation7 + $0xc] sm:$0xf]
        %v1003 = vld [vmem:[#allocation7 + $0x10] sm:$0xf]
        %v1004 = vld [vmem:[#allocation7 + $0x14] sm:$0xf]
        %v1005 = vld [vmem:[#allocation7 + $0x18] sm:$0xf]
        %v1006 = vld [vmem:[#allocation7 + $0x1c] sm:$0xf]
        %v1007 = vld [vmem:[#allocation7 + $0x20] sm:$0xf]
        %v1008 = vld [vmem:[#allocation7 + $0x24] sm:$0xf]
        %v1009 = vld [vmem:[#allocation7 + $0x28] sm:$0xf]
        %v1010 = vld [vmem:[#allocation7 + $0x2c] sm:$0xf]
        %v1011 = vld [vmem:[#allocation7 + $0x30] sm:$0xf]
        %v1012 = vld [vmem:[#allocation7 + $0x34] sm:$0xf]
        %v1013 = vld [vmem:[#allocation7 + $0x38] sm:$0xf]
        %v1014 = vld [vmem:[#allocation7 + $0x3c] sm:$0xf]
        %v1015 = vld [vmem:[#allocation8] sm:$0x1]
        %v1017 = vperm.slane %v1015, 0
        %v1035 = vunpack.c.l.b16 %v999
        %v1036 = vunpack.c.l.b16 %v1000
        %v1037 = vunpack.c.l.b16 %v1001
        %v1038 = vunpack.c.l.b16 %v1002
        %v1039 = vunpack.c.l.b16 %v1003
        %v1040 = vunpack.c.l.b16 %v1004
        %v1041 = vunpack.c.l.b16 %v1005
        %v1042 = vunpack.c.l.b16 %v1006
        %v1043 = vunpack.c.l.b16 %v1007
        %v1044 = vunpack.c.l.b16 %v1008
        %v1045 = vunpack.c.l.b16 %v1009
        %v1046 = vunpack.c.l.b16 %v1010
        %v1047 = vunpack.c.l.b16 %v1011
        %v1048 = vunpack.c.l.b16 %v1012
        %v1049 = vunpack.c.l.b16 %v1013
        %v1050 = vunpack.c.l.b16 %v1014
        %v1051 = vpack.c.b16 %v1036, %v1035
        %v1052 = vpack.c.b16 %v1038, %v1037
        %v1053 = vpack.c.b16 %v1040, %v1039
        %v1054 = vpack.c.b16 %v1042, %v1041
        %v1055 = vpack.c.b16 %v1044, %v1043
        %v1056 = vpack.c.b16 %v1046, %v1045
        %v1057 = vpack.c.b16 %v1048, %v1047
        %v1058 = vpack.c.b16 %v1050, %v1049
        %1067 = vmatpush.bf16.msra.mxu0 %v1058
        %1068 = vmatpush.bf16.msra.mxu0 %v1057
        %1069 = vmatpush.bf16.msra.mxu0 %v1056
        %1070 = vmatpush.bf16.msra.mxu0 %v1055
        %1071 = vmatpush.bf16.msra.mxu0 %v1054
        %1072 = vmatpush.bf16.msra.mxu0 %v1053
        %1073 = vmatpush.bf16.msra.mxu0 %v1052
        %1074 = vmatpush.bf16.msra.mxu0 %v1051
        %1075 = vmatmul.bf16.gmra.mxu0 %v991
        %v1076 = vpop.f32.mrf.mxu0
        %v1077 = vadd.f32 %v1017, %v1076
        %v1078 = vpop.f32.mrf.mxu0
        %v1079 = vadd.f32 %v1017, %v1078
        %1080 = vmatmul.bf16.gmra.mxu0 %v992
        %v1081 = vpop.f32.mrf.mxu0
        %v1082 = vadd.f32 %v1017, %v1081
        %v1083 = vpop.f32.mrf.mxu0
        %v1084 = vadd.f32 %v1017, %v1083
        %1085 = vmatmul.bf16.gmra.mxu0 %v993
        %v1086 = vpop.f32.mrf.mxu0
        %v1087 = vadd.f32 %v1017, %v1086
        %v1088 = vpop.f32.mrf.mxu0
        %v1089 = vadd.f32 %v1017, %v1088
        %1090 = vmatmul.bf16.gmra.mxu0 %v994
        %v1091 = vpop.f32.mrf.mxu0
        %v1092 = vadd.f32 %v1017, %v1091
        %v1093 = vpop.f32.mrf.mxu0
        %v1094 = vadd.f32 %v1017, %v1093
        %1095 = vmatmul.bf16.gmra.mxu0 %v995
        %v1096 = vpop.f32.mrf.mxu0
        %v1097 = vadd.f32 %v1017, %v1096
        %v1098 = vpop.f32.mrf.mxu0
        %v1099 = vadd.f32 %v1017, %v1098
        %1100 = vmatmul.bf16.gmra.mxu0 %v996
        %v1101 = vpop.f32.mrf.mxu0
        %v1102 = vadd.f32 %v1017, %v1101
        %v1103 = vpop.f32.mrf.mxu0
        %v1104 = vadd.f32 %v1017, %v1103
        %1105 = vmatmul.bf16.gmra.mxu0 %v997
        %v1106 = vpop.f32.mrf.mxu0
        %v1107 = vadd.f32 %v1017, %v1106
        %v1108 = vpop.f32.mrf.mxu0
        %v1109 = vadd.f32 %v1017, %v1108
        %1110 = vmatmul.bf16.gmra.mxu0 %v998
        %v1111 = vpop.f32.mrf.mxu0
        %v1112 = vadd.f32 %v1017, %v1111
        %v1113 = vpop.f32.mrf.mxu0
        %v1114 = vadd.f32 %v1017, %v1113
        %1115 = vdwg.mxu0
        %vm1116 = vcmp.gt.f32.partialorder %v1077, 0.0
        %vm1117 = vcmp.gt.f32.partialorder %v1079, 0.0
        %vm1118 = vcmp.gt.f32.partialorder %v1082, 0.0
        %vm1119 = vcmp.gt.f32.partialorder %v1084, 0.0
        %vm1120 = vcmp.gt.f32.partialorder %v1087, 0.0
        %vm1121 = vcmp.gt.f32.partialorder %v1089, 0.0
        %vm1122 = vcmp.gt.f32.partialorder %v1092, 0.0
        %vm1123 = vcmp.gt.f32.partialorder %v1094, 0.0
        %vm1124 = vcmp.gt.f32.partialorder %v1097, 0.0
        %vm1125 = vcmp.gt.f32.partialorder %v1099, 0.0
        %vm1126 = vcmp.gt.f32.partialorder %v1102, 0.0
        %vm1127 = vcmp.gt.f32.partialorder %v1104, 0.0
        %vm1128 = vcmp.gt.f32.partialorder %v1107, 0.0
        %vm1129 = vcmp.gt.f32.partialorder %v1109, 0.0
        %vm1130 = vcmp.gt.f32.partialorder %v1112, 0.0
        %vm1131 = vcmp.gt.f32.partialorder %v1114, 0.0
        %v1132 = vmul.f32 %v1077, 0.1
        %v1133 = vmul.f32 %v1079, 0.1
        %v1134 = vmul.f32 %v1082, 0.1
        %v1135 = vmul.f32 %v1084, 0.1
        %v1136 = vmul.f32 %v1087, 0.1
        %v1137 = vmul.f32 %v1089, 0.1
        %v1138 = vmul.f32 %v1092, 0.1
        %v1139 = vmul.f32 %v1094, 0.1
        %v1140 = vmul.f32 %v1097, 0.1
        %v1141 = vmul.f32 %v1099, 0.1
        %v1142 = vmul.f32 %v1102, 0.1
        %v1143 = vmul.f32 %v1104, 0.1
        %v1144 = vmul.f32 %v1107, 0.1
        %v1145 = vmul.f32 %v1109, 0.1
        %v1146 = vmul.f32 %v1112, 0.1
        %v1147 = vmul.f32 %v1114, 0.1
        %v1148 = vsel %vm1116, %v1077, %v1132
        %v1149 = vsel %vm1117, %v1079, %v1133
        %v1150 = vsel %vm1118, %v1082, %v1134
        %v1151 = vsel %vm1119, %v1084, %v1135
        %v1152 = vsel %vm1120, %v1087, %v1136
        %v1153 = vsel %vm1121, %v1089, %v1137
        %v1154 = vsel %vm1122, %v1092, %v1138
        %v1155 = vsel %vm1123, %v1094, %v1139
        %v1156 = vsel %vm1124, %v1097, %v1140
        %v1157 = vsel %vm1125, %v1099, %v1141
        %v1158 = vsel %vm1126, %v1102, %v1142
        %v1159 = vsel %vm1127, %v1104, %v1143
        %v1160 = vsel %vm1128, %v1107, %v1144
        %v1161 = vsel %vm1129, %v1109, %v1145
        %v1162 = vsel %vm1130, %v1112, %v1146
        %v1163 = vsel %vm1131, %v1114, %v1147
        %v1164 = vpack.c.bf16 %v1149, %v1148
        %v1165 = vpack.c.bf16 %v1151, %v1150
        %v1166 = vpack.c.bf16 %v1153, %v1152
        %v1167 = vpack.c.bf16 %v1155, %v1154
        %v1168 = vpack.c.bf16 %v1157, %v1156
        %v1169 = vpack.c.bf16 %v1159, %v1158
        %v1170 = vpack.c.bf16 %v1161, %v1160
        %v1171 = vpack.c.bf16 %v1163, %v1162
        %v1172 = vld [vmem:[#allocation10] sm:$0xf]
        %v1173 = vld [vmem:[#allocation10 + $0x4] sm:$0xf]
        %v1174 = vld [vmem:[#allocation10 + $0x8] sm:$0xf]
        %v1175 = vld [vmem:[#allocation10 + $0xc] sm:$0xf]
        %v1176 = vld [vmem:[#allocation10 + $0x10] sm:$0xf]
        %v1177 = vld [vmem:[#allocation10 + $0x14] sm:$0xf]
        %v1178 = vld [vmem:[#allocation10 + $0x18] sm:$0xf]
        %v1179 = vld [vmem:[#allocation10 + $0x1c] sm:$0xf]
        %v1180 = vld [vmem:[#allocation10 + $0x20] sm:$0xf]
        %v1181 = vld [vmem:[#allocation10 + $0x24] sm:$0xf]
        %v1182 = vld [vmem:[#allocation10 + $0x28] sm:$0xf]
        %v1183 = vld [vmem:[#allocation10 + $0x2c] sm:$0xf]
        %v1184 = vld [vmem:[#allocation10 + $0x30] sm:$0xf]
        %v1185 = vld [vmem:[#allocation10 + $0x34] sm:$0xf]
        %v1186 = vld [vmem:[#allocation10 + $0x38] sm:$0xf]
        %v1187 = vld [vmem:[#allocation10 + $0x3c] sm:$0xf]
        %v1188 = vld [vmem:[%s6] sm:$0x1]
        %v1190 = vperm.slane %v1188, 0
        %v1208 = vunpack.c.l.b16 %v1172
        %v1209 = vunpack.c.l.b16 %v1173
        %v1210 = vunpack.c.l.b16 %v1174
        %v1211 = vunpack.c.l.b16 %v1175
        %v1212 = vunpack.c.l.b16 %v1176
        %v1213 = vunpack.c.l.b16 %v1177
        %v1214 = vunpack.c.l.b16 %v1178
        %v1215 = vunpack.c.l.b16 %v1179
        %v1216 = vunpack.c.l.b16 %v1180
        %v1217 = vunpack.c.l.b16 %v1181
        %v1218 = vunpack.c.l.b16 %v1182
        %v1219 = vunpack.c.l.b16 %v1183
        %v1220 = vunpack.c.l.b16 %v1184
        %v1221 = vunpack.c.l.b16 %v1185
        %v1222 = vunpack.c.l.b16 %v1186
        %v1223 = vunpack.c.l.b16 %v1187
        %v1224 = vpack.c.b16 %v1209, %v1208
        %v1225 = vpack.c.b16 %v1211, %v1210
        %v1226 = vpack.c.b16 %v1213, %v1212
        %v1227 = vpack.c.b16 %v1215, %v1214
        %v1228 = vpack.c.b16 %v1217, %v1216
        %v1229 = vpack.c.b16 %v1219, %v1218
        %v1230 = vpack.c.b16 %v1221, %v1220
        %v1231 = vpack.c.b16 %v1223, %v1222
        %1240 = vmatpush.bf16.msra.mxu0 %v1231
        %1241 = vmatpush.bf16.msra.mxu0 %v1230
        %1242 = vmatpush.bf16.msra.mxu0 %v1229
        %1243 = vmatpush.bf16.msra.mxu0 %v1228
        %1244 = vmatpush.bf16.msra.mxu0 %v1227
        %1245 = vmatpush.bf16.msra.mxu0 %v1226
        %1246 = vmatpush.bf16.msra.mxu0 %v1225
        %1247 = vmatpush.bf16.msra.mxu0 %v1224
        %1248 = vmatmul.bf16.gmra.mxu0 %v1164
        %v1249 = vpop.f32.mrf.mxu0
        %v1250 = vadd.f32 %v1190, %v1249
        %v1251 = vpop.f32.mrf.mxu0
        %v1252 = vadd.f32 %v1190, %v1251
        %1253 = vmatmul.bf16.gmra.mxu0 %v1165
        %v1254 = vpop.f32.mrf.mxu0
        %v1255 = vadd.f32 %v1190, %v1254
        %v1256 = vpop.f32.mrf.mxu0
        %v1257 = vadd.f32 %v1190, %v1256
        %1258 = vmatmul.bf16.gmra.mxu0 %v1166
        %v1259 = vpop.f32.mrf.mxu0
        %v1260 = vadd.f32 %v1190, %v1259
        %v1261 = vpop.f32.mrf.mxu0
        %v1262 = vadd.f32 %v1190, %v1261
        %1263 = vmatmul.bf16.gmra.mxu0 %v1167
        %v1264 = vpop.f32.mrf.mxu0
        %v1265 = vadd.f32 %v1190, %v1264
        %v1266 = vpop.f32.mrf.mxu0
        %v1267 = vadd.f32 %v1190, %v1266
        %1268 = vmatmul.bf16.gmra.mxu0 %v1168
        %v1269 = vpop.f32.mrf.mxu0
        %v1270 = vadd.f32 %v1190, %v1269
        %v1271 = vpop.f32.mrf.mxu0
        %v1272 = vadd.f32 %v1190, %v1271
        %1273 = vmatmul.bf16.gmra.mxu0 %v1169
        %v1274 = vpop.f32.mrf.mxu0
        %v1275 = vadd.f32 %v1190, %v1274
        %v1276 = vpop.f32.mrf.mxu0
        %v1277 = vadd.f32 %v1190, %v1276
        %1278 = vmatmul.bf16.gmra.mxu0 %v1170
        %v1279 = vpop.f32.mrf.mxu0
        %v1280 = vadd.f32 %v1190, %v1279
        %v1281 = vpop.f32.mrf.mxu0
        %v1282 = vadd.f32 %v1190, %v1281
        %1283 = vmatmul.bf16.gmra.mxu0 %v1171
        %v1284 = vpop.f32.mrf.mxu0
        %v1285 = vadd.f32 %v1190, %v1284
        %v1286 = vpop.f32.mrf.mxu0
        %v1287 = vadd.f32 %v1190, %v1286
        %1288 = vdwg.mxu0
        %vm1289 = vcmp.gt.f32.partialorder %v1250, 0.0
        %vm1290 = vcmp.gt.f32.partialorder %v1252, 0.0
        %vm1291 = vcmp.gt.f32.partialorder %v1255, 0.0
        %vm1292 = vcmp.gt.f32.partialorder %v1257, 0.0
        %vm1293 = vcmp.gt.f32.partialorder %v1260, 0.0
        %vm1294 = vcmp.gt.f32.partialorder %v1262, 0.0
        %vm1295 = vcmp.gt.f32.partialorder %v1265, 0.0
        %vm1296 = vcmp.gt.f32.partialorder %v1267, 0.0
        %vm1297 = vcmp.gt.f32.partialorder %v1270, 0.0
        %vm1298 = vcmp.gt.f32.partialorder %v1272, 0.0
        %vm1299 = vcmp.gt.f32.partialorder %v1275, 0.0
        %vm1300 = vcmp.gt.f32.partialorder %v1277, 0.0
        %vm1301 = vcmp.gt.f32.partialorder %v1280, 0.0
        %vm1302 = vcmp.gt.f32.partialorder %v1282, 0.0
        %vm1303 = vcmp.gt.f32.partialorder %v1285, 0.0
        %vm1304 = vcmp.gt.f32.partialorder %v1287, 0.0
        %v1305 = vmul.f32 %v1250, 0.1
        %v1306 = vmul.f32 %v1252, 0.1
        %v1307 = vmul.f32 %v1255, 0.1
        %v1308 = vmul.f32 %v1257, 0.1
        %v1309 = vmul.f32 %v1260, 0.1
        %v1310 = vmul.f32 %v1262, 0.1
        %v1311 = vmul.f32 %v1265, 0.1
        %v1312 = vmul.f32 %v1267, 0.1
        %v1313 = vmul.f32 %v1270, 0.1
        %v1314 = vmul.f32 %v1272, 0.1
        %v1315 = vmul.f32 %v1275, 0.1
        %v1316 = vmul.f32 %v1277, 0.1
        %v1317 = vmul.f32 %v1280, 0.1
        %v1318 = vmul.f32 %v1282, 0.1
        %v1319 = vmul.f32 %v1285, 0.1
        %v1320 = vmul.f32 %v1287, 0.1
        %v1321 = vsel %vm1289, %v1250, %v1305
        %v1322 = vsel %vm1290, %v1252, %v1306
        %v1323 = vsel %vm1291, %v1255, %v1307
        %v1324 = vsel %vm1292, %v1257, %v1308
        %v1325 = vsel %vm1293, %v1260, %v1309
        %v1326 = vsel %vm1294, %v1262, %v1310
        %v1327 = vsel %vm1295, %v1265, %v1311
        %v1328 = vsel %vm1296, %v1267, %v1312
        %v1329 = vsel %vm1297, %v1270, %v1313
        %v1330 = vsel %vm1298, %v1272, %v1314
        %v1331 = vsel %vm1299, %v1275, %v1315
        %v1332 = vsel %vm1300, %v1277, %v1316
        %v1333 = vsel %vm1301, %v1280, %v1317
        %v1334 = vsel %vm1302, %v1282, %v1318
        %v1335 = vsel %vm1303, %v1285, %v1319
        %v1336 = vsel %vm1304, %v1287, %v1320
        %1337 = vst [vmem:[%s606] sm:$0xff] %v1321
        %1338 = vst [vmem:[%s606 + $0x8] sm:$0xff] %v1322
        %1339 = vst [vmem:[%s606 + $0x10] sm:$0xff] %v1323
        %1340 = vst [vmem:[%s606 + $0x18] sm:$0xff] %v1324
        %1341 = vst [vmem:[%s606 + $0x20] sm:$0xff] %v1325
        %1342 = vst [vmem:[%s606 + $0x28] sm:$0xff] %v1326
        %1343 = vst [vmem:[%s606 + $0x30] sm:$0xff] %v1327
        %1344 = vst [vmem:[%s606 + $0x38] sm:$0xff] %v1328
        %1345 = vst [vmem:[%s606 + $0x40] sm:$0xff] %v1329
        %1346 = vst [vmem:[%s606 + $0x48] sm:$0xff] %v1330
        %1347 = vst [vmem:[%s606 + $0x50] sm:$0xff] %v1331
        %1348 = vst [vmem:[%s606 + $0x58] sm:$0xff] %v1332
        %1349 = vst [vmem:[%s606 + $0x60] sm:$0xff] %v1333
        %1350 = vst [vmem:[%s606 + $0x68] sm:$0xff] %v1334
        %1351 = vst [vmem:[%s606 + $0x70] sm:$0xff] %v1335
        %1352 = vst [vmem:[%s606 + $0x78] sm:$0xff] %v1336
        %v1353 = vpack.c.bf16 %v1322, %v1321
        %v1354 = vpack.c.bf16 %v1324, %v1323
        %v1355 = vpack.c.bf16 %v1326, %v1325
        %v1356 = vpack.c.bf16 %v1328, %v1327
        %v1357 = vpack.c.bf16 %v1330, %v1329
        %v1358 = vpack.c.bf16 %v1332, %v1331
        %v1359 = vpack.c.bf16 %v1334, %v1333
        %v1360 = vpack.c.bf16 %v1336, %v1335
        %v1361 = vld [vmem:[#allocation11] sm:$0xf]
        %v1362 = vld [vmem:[#allocation11 + $0x4] sm:$0xf]
        %v1363 = vld [vmem:[#allocation11 + $0x8] sm:$0xf]
        %v1364 = vld [vmem:[#allocation11 + $0xc] sm:$0xf]
        %v1365 = vld [vmem:[#allocation11 + $0x10] sm:$0xf]
        %v1366 = vld [vmem:[#allocation11 + $0x14] sm:$0xf]
        %v1367 = vld [vmem:[#allocation11 + $0x18] sm:$0xf]
        %v1368 = vld [vmem:[#allocation11 + $0x1c] sm:$0xf]
        %v1369 = vld [vmem:[#allocation11 + $0x20] sm:$0xf]
        %v1370 = vld [vmem:[#allocation11 + $0x24] sm:$0xf]
        %v1371 = vld [vmem:[#allocation11 + $0x28] sm:$0xf]
        %v1372 = vld [vmem:[#allocation11 + $0x2c] sm:$0xf]
        %v1373 = vld [vmem:[#allocation11 + $0x30] sm:$0xf]
        %v1374 = vld [vmem:[#allocation11 + $0x34] sm:$0xf]
        %v1375 = vld [vmem:[#allocation11 + $0x38] sm:$0xf]
        %v1376 = vld [vmem:[#allocation11 + $0x3c] sm:$0xf]
        %v1377 = vld [vmem:[%s8] sm:$0x1]
        %v1379 = vperm.slane %v1377, 0
        %v1397 = vunpack.c.l.b16 %v1361
        %v1398 = vunpack.c.l.b16 %v1362
        %v1399 = vunpack.c.l.b16 %v1363
        %v1400 = vunpack.c.l.b16 %v1364
        %v1401 = vunpack.c.l.b16 %v1365
        %v1402 = vunpack.c.l.b16 %v1366
        %v1403 = vunpack.c.l.b16 %v1367
        %v1404 = vunpack.c.l.b16 %v1368
        %v1405 = vunpack.c.l.b16 %v1369
        %v1406 = vunpack.c.l.b16 %v1370
        %v1407 = vunpack.c.l.b16 %v1371
        %v1408 = vunpack.c.l.b16 %v1372
        %v1409 = vunpack.c.l.b16 %v1373
        %v1410 = vunpack.c.l.b16 %v1374
        %v1411 = vunpack.c.l.b16 %v1375
        %v1412 = vunpack.c.l.b16 %v1376
        %v1413 = vpack.c.b16 %v1398, %v1397
        %v1414 = vpack.c.b16 %v1400, %v1399
        %v1415 = vpack.c.b16 %v1402, %v1401
        %v1416 = vpack.c.b16 %v1404, %v1403
        %v1417 = vpack.c.b16 %v1406, %v1405
        %v1418 = vpack.c.b16 %v1408, %v1407
        %v1419 = vpack.c.b16 %v1410, %v1409
        %v1420 = vpack.c.b16 %v1412, %v1411
        %1429 = vmatpush.bf16.msra.mxu0 %v1420
        %1430 = vmatpush.bf16.msra.mxu0 %v1419
        %1431 = vmatpush.bf16.msra.mxu0 %v1418
        %1432 = vmatpush.bf16.msra.mxu0 %v1417
        %1433 = vmatpush.bf16.msra.mxu0 %v1416
        %1434 = vmatpush.bf16.msra.mxu0 %v1415
        %1435 = vmatpush.bf16.msra.mxu0 %v1414
        %1436 = vmatpush.bf16.msra.mxu0 %v1413
        %1437 = vmatmul.bf16.gmra.mxu0 %v1353
        %v1438 = vpop.f32.mrf.mxu0
        %v1439 = vadd.f32 %v1379, %v1438
        %v1440 = vpop.f32.mrf.mxu0
        %v1441 = vadd.f32 %v1379, %v1440
        %1442 = vmatmul.bf16.gmra.mxu0 %v1354
        %v1443 = vpop.f32.mrf.mxu0
        %v1444 = vadd.f32 %v1379, %v1443
        %v1445 = vpop.f32.mrf.mxu0
        %v1446 = vadd.f32 %v1379, %v1445
        %1447 = vmatmul.bf16.gmra.mxu0 %v1355
        %v1448 = vpop.f32.mrf.mxu0
        %v1449 = vadd.f32 %v1379, %v1448
        %v1450 = vpop.f32.mrf.mxu0
        %v1451 = vadd.f32 %v1379, %v1450
        %1452 = vmatmul.bf16.gmra.mxu0 %v1356
        %v1453 = vpop.f32.mrf.mxu0
        %v1454 = vadd.f32 %v1379, %v1453
        %v1455 = vpop.f32.mrf.mxu0
        %v1456 = vadd.f32 %v1379, %v1455
        %1457 = vmatmul.bf16.gmra.mxu0 %v1357
        %v1458 = vpop.f32.mrf.mxu0
        %v1459 = vadd.f32 %v1379, %v1458
        %v1460 = vpop.f32.mrf.mxu0
        %v1461 = vadd.f32 %v1379, %v1460
        %1462 = vmatmul.bf16.gmra.mxu0 %v1358
        %v1463 = vpop.f32.mrf.mxu0
        %v1464 = vadd.f32 %v1379, %v1463
        %v1465 = vpop.f32.mrf.mxu0
        %v1466 = vadd.f32 %v1379, %v1465
        %1467 = vmatmul.bf16.gmra.mxu0 %v1359
        %v1468 = vpop.f32.mrf.mxu0
        %v1469 = vadd.f32 %v1379, %v1468
        %v1470 = vpop.f32.mrf.mxu0
        %v1471 = vadd.f32 %v1379, %v1470
        %1472 = vmatmul.bf16.gmra.mxu0 %v1360
        %v1473 = vpop.f32.mrf.mxu0
        %v1474 = vadd.f32 %v1379, %v1473
        %v1475 = vpop.f32.mrf.mxu0
        %v1476 = vadd.f32 %v1379, %v1475
        %1477 = vdwg.mxu0
        %vm1478 = vcmp.gt.f32.partialorder %v1439, 0.0
        %vm1479 = vcmp.gt.f32.partialorder %v1441, 0.0
        %vm1480 = vcmp.gt.f32.partialorder %v1444, 0.0
        %vm1481 = vcmp.gt.f32.partialorder %v1446, 0.0
        %vm1482 = vcmp.gt.f32.partialorder %v1449, 0.0
        %vm1483 = vcmp.gt.f32.partialorder %v1451, 0.0
        %vm1484 = vcmp.gt.f32.partialorder %v1454, 0.0
        %vm1485 = vcmp.gt.f32.partialorder %v1456, 0.0
        %vm1486 = vcmp.gt.f32.partialorder %v1459, 0.0
        %vm1487 = vcmp.gt.f32.partialorder %v1461, 0.0
        %vm1488 = vcmp.gt.f32.partialorder %v1464, 0.0
        %vm1489 = vcmp.gt.f32.partialorder %v1466, 0.0
        %vm1490 = vcmp.gt.f32.partialorder %v1469, 0.0
        %vm1491 = vcmp.gt.f32.partialorder %v1471, 0.0
        %vm1492 = vcmp.gt.f32.partialorder %v1474, 0.0
        %vm1493 = vcmp.gt.f32.partialorder %v1476, 0.0
        %v1494 = vmul.f32 %v1439, 0.1
        %v1495 = vmul.f32 %v1441, 0.1
        %v1496 = vmul.f32 %v1444, 0.1
        %v1497 = vmul.f32 %v1446, 0.1
        %v1498 = vmul.f32 %v1449, 0.1
        %v1499 = vmul.f32 %v1451, 0.1
        %v1500 = vmul.f32 %v1454, 0.1
        %v1501 = vmul.f32 %v1456, 0.1
        %v1502 = vmul.f32 %v1459, 0.1
        %v1503 = vmul.f32 %v1461, 0.1
        %v1504 = vmul.f32 %v1464, 0.1
        %v1505 = vmul.f32 %v1466, 0.1
        %v1506 = vmul.f32 %v1469, 0.1
        %v1507 = vmul.f32 %v1471, 0.1
        %v1508 = vmul.f32 %v1474, 0.1
        %v1509 = vmul.f32 %v1476, 0.1
        %v1510 = vsel %vm1478, %v1439, %v1494
        %v1511 = vsel %vm1479, %v1441, %v1495
        %v1512 = vsel %vm1480, %v1444, %v1496
        %v1513 = vsel %vm1481, %v1446, %v1497
        %v1514 = vsel %vm1482, %v1449, %v1498
        %v1515 = vsel %vm1483, %v1451, %v1499
        %v1516 = vsel %vm1484, %v1454, %v1500
        %v1517 = vsel %vm1485, %v1456, %v1501
        %v1518 = vsel %vm1486, %v1459, %v1502
        %v1519 = vsel %vm1487, %v1461, %v1503
        %v1520 = vsel %vm1488, %v1464, %v1504
        %v1521 = vsel %vm1489, %v1466, %v1505
        %v1522 = vsel %vm1490, %v1469, %v1506
        %v1523 = vsel %vm1491, %v1471, %v1507
        %v1524 = vsel %vm1492, %v1474, %v1508
        %v1525 = vsel %vm1493, %v1476, %v1509
        %v1526 = vpack.c.bf16 %v1511, %v1510
        %v1527 = vpack.c.bf16 %v1513, %v1512
        %v1528 = vpack.c.bf16 %v1515, %v1514
        %v1529 = vpack.c.bf16 %v1517, %v1516
        %v1530 = vpack.c.bf16 %v1519, %v1518
        %v1531 = vpack.c.bf16 %v1521, %v1520
        %v1532 = vpack.c.bf16 %v1523, %v1522
        %v1533 = vpack.c.bf16 %v1525, %v1524
        %v1534 = vld [vmem:[#allocation13] sm:$0xf]
        %v1535 = vld [vmem:[#allocation13 + $0x4] sm:$0xf]
        %v1536 = vld [vmem:[#allocation13 + $0x8] sm:$0xf]
        %v1537 = vld [vmem:[#allocation13 + $0xc] sm:$0xf]
        %v1538 = vld [vmem:[#allocation13 + $0x10] sm:$0xf]
        %v1539 = vld [vmem:[#allocation13 + $0x14] sm:$0xf]
        %v1540 = vld [vmem:[#allocation13 + $0x18] sm:$0xf]
        %v1541 = vld [vmem:[#allocation13 + $0x1c] sm:$0xf]
        %v1542 = vld [vmem:[#allocation13 + $0x20] sm:$0xf]
        %v1543 = vld [vmem:[#allocation13 + $0x24] sm:$0xf]
        %v1544 = vld [vmem:[#allocation13 + $0x28] sm:$0xf]
        %v1545 = vld [vmem:[#allocation13 + $0x2c] sm:$0xf]
        %v1546 = vld [vmem:[#allocation13 + $0x30] sm:$0xf]
        %v1547 = vld [vmem:[#allocation13 + $0x34] sm:$0xf]
        %v1548 = vld [vmem:[#allocation13 + $0x38] sm:$0xf]
        %v1549 = vld [vmem:[#allocation13 + $0x3c] sm:$0xf]
        %v1550 = vld [vmem:[%s10] sm:$0x1]
        %v1552 = vperm.slane %v1550, 0
        %v1570 = vunpack.c.l.b16 %v1534
        %v1571 = vunpack.c.l.b16 %v1535
        %v1572 = vunpack.c.l.b16 %v1536
        %v1573 = vunpack.c.l.b16 %v1537
        %v1574 = vunpack.c.l.b16 %v1538
        %v1575 = vunpack.c.l.b16 %v1539
        %v1576 = vunpack.c.l.b16 %v1540
        %v1577 = vunpack.c.l.b16 %v1541
        %v1578 = vunpack.c.l.b16 %v1542
        %v1579 = vunpack.c.l.b16 %v1543
        %v1580 = vunpack.c.l.b16 %v1544
        %v1581 = vunpack.c.l.b16 %v1545
        %v1582 = vunpack.c.l.b16 %v1546
        %v1583 = vunpack.c.l.b16 %v1547
        %v1584 = vunpack.c.l.b16 %v1548
        %v1585 = vunpack.c.l.b16 %v1549
        %v1586 = vpack.c.b16 %v1571, %v1570
        %v1587 = vpack.c.b16 %v1573, %v1572
        %v1588 = vpack.c.b16 %v1575, %v1574
        %v1589 = vpack.c.b16 %v1577, %v1576
        %v1590 = vpack.c.b16 %v1579, %v1578
        %v1591 = vpack.c.b16 %v1581, %v1580
        %v1592 = vpack.c.b16 %v1583, %v1582
        %v1593 = vpack.c.b16 %v1585, %v1584
        %1602 = vmatpush.bf16.msra.mxu0 %v1593
        %1603 = vmatpush.bf16.msra.mxu0 %v1592
        %1604 = vmatpush.bf16.msra.mxu0 %v1591
        %1605 = vmatpush.bf16.msra.mxu0 %v1590
        %1606 = vmatpush.bf16.msra.mxu0 %v1589
        %1607 = vmatpush.bf16.msra.mxu0 %v1588
        %1608 = vmatpush.bf16.msra.mxu0 %v1587
        %1609 = vmatpush.bf16.msra.mxu0 %v1586
        %1610 = vmatmul.bf16.gmra.mxu0 %v1526
        %v1611 = vpop.f32.mrf.mxu0
        %v1612 = vadd.f32 %v1552, %v1611
        %v1613 = vpop.f32.mrf.mxu0
        %v1614 = vadd.f32 %v1552, %v1613
        %1615 = vmatmul.bf16.gmra.mxu0 %v1527
        %v1616 = vpop.f32.mrf.mxu0
        %v1617 = vadd.f32 %v1552, %v1616
        %v1618 = vpop.f32.mrf.mxu0
        %v1619 = vadd.f32 %v1552, %v1618
        %1620 = vmatmul.bf16.gmra.mxu0 %v1528
        %v1621 = vpop.f32.mrf.mxu0
        %v1622 = vadd.f32 %v1552, %v1621
        %v1623 = vpop.f32.mrf.mxu0
        %v1624 = vadd.f32 %v1552, %v1623
        %1625 = vmatmul.bf16.gmra.mxu0 %v1529
        %v1626 = vpop.f32.mrf.mxu0
        %v1627 = vadd.f32 %v1552, %v1626
        %v1628 = vpop.f32.mrf.mxu0
        %v1629 = vadd.f32 %v1552, %v1628
        %1630 = vmatmul.bf16.gmra.mxu0 %v1530
        %v1631 = vpop.f32.mrf.mxu0
        %v1632 = vadd.f32 %v1552, %v1631
        %v1633 = vpop.f32.mrf.mxu0
        %v1634 = vadd.f32 %v1552, %v1633
        %1635 = vmatmul.bf16.gmra.mxu0 %v1531
        %v1636 = vpop.f32.mrf.mxu0
        %v1637 = vadd.f32 %v1552, %v1636
        %v1638 = vpop.f32.mrf.mxu0
        %v1639 = vadd.f32 %v1552, %v1638
        %1640 = vmatmul.bf16.gmra.mxu0 %v1532
        %v1641 = vpop.f32.mrf.mxu0
        %v1642 = vadd.f32 %v1552, %v1641
        %v1643 = vpop.f32.mrf.mxu0
        %v1644 = vadd.f32 %v1552, %v1643
        %1645 = vmatmul.bf16.gmra.mxu0 %v1533
        %v1646 = vpop.f32.mrf.mxu0
        %v1647 = vadd.f32 %v1552, %v1646
        %v1648 = vpop.f32.mrf.mxu0
        %v1649 = vadd.f32 %v1552, %v1648
        %1650 = vdwg.mxu0
        %vm1651 = vcmp.gt.f32.partialorder %v1612, 0.0
        %vm1652 = vcmp.gt.f32.partialorder %v1614, 0.0
        %vm1653 = vcmp.gt.f32.partialorder %v1617, 0.0
        %vm1654 = vcmp.gt.f32.partialorder %v1619, 0.0
        %vm1655 = vcmp.gt.f32.partialorder %v1622, 0.0
        %vm1656 = vcmp.gt.f32.partialorder %v1624, 0.0
        %vm1657 = vcmp.gt.f32.partialorder %v1627, 0.0
        %vm1658 = vcmp.gt.f32.partialorder %v1629, 0.0
        %vm1659 = vcmp.gt.f32.partialorder %v1632, 0.0
        %vm1660 = vcmp.gt.f32.partialorder %v1634, 0.0
        %vm1661 = vcmp.gt.f32.partialorder %v1637, 0.0
        %vm1662 = vcmp.gt.f32.partialorder %v1639, 0.0
        %vm1663 = vcmp.gt.f32.partialorder %v1642, 0.0
        %vm1664 = vcmp.gt.f32.partialorder %v1644, 0.0
        %vm1665 = vcmp.gt.f32.partialorder %v1647, 0.0
        %vm1666 = vcmp.gt.f32.partialorder %v1649, 0.0
        %v1667 = vmul.f32 %v1612, 0.1
        %v1668 = vmul.f32 %v1614, 0.1
        %v1669 = vmul.f32 %v1617, 0.1
        %v1670 = vmul.f32 %v1619, 0.1
        %v1671 = vmul.f32 %v1622, 0.1
        %v1672 = vmul.f32 %v1624, 0.1
        %v1673 = vmul.f32 %v1627, 0.1
        %v1674 = vmul.f32 %v1629, 0.1
        %v1675 = vmul.f32 %v1632, 0.1
        %v1676 = vmul.f32 %v1634, 0.1
        %v1677 = vmul.f32 %v1637, 0.1
        %v1678 = vmul.f32 %v1639, 0.1
        %v1679 = vmul.f32 %v1642, 0.1
        %v1680 = vmul.f32 %v1644, 0.1
        %v1681 = vmul.f32 %v1647, 0.1
        %v1682 = vmul.f32 %v1649, 0.1
        %v1683 = vsel %vm1651, %v1612, %v1667
        %v1684 = vsel %vm1652, %v1614, %v1668
        %v1685 = vsel %vm1653, %v1617, %v1669
        %v1686 = vsel %vm1654, %v1619, %v1670
        %v1687 = vsel %vm1655, %v1622, %v1671
        %v1688 = vsel %vm1656, %v1624, %v1672
        %v1689 = vsel %vm1657, %v1627, %v1673
        %v1690 = vsel %vm1658, %v1629, %v1674
        %v1691 = vsel %vm1659, %v1632, %v1675
        %v1692 = vsel %vm1660, %v1634, %v1676
        %v1693 = vsel %vm1661, %v1637, %v1677
        %v1694 = vsel %vm1662, %v1639, %v1678
        %v1695 = vsel %vm1663, %v1642, %v1679
        %v1696 = vsel %vm1664, %v1644, %v1680
        %v1697 = vsel %vm1665, %v1647, %v1681
        %v1698 = vsel %vm1666, %v1649, %v1682
        %v1699 = vpack.c.bf16 %v1684, %v1683
        %v1700 = vpack.c.bf16 %v1686, %v1685
        %v1701 = vpack.c.bf16 %v1688, %v1687
        %v1702 = vpack.c.bf16 %v1690, %v1689
        %v1703 = vpack.c.bf16 %v1692, %v1691
        %v1704 = vpack.c.bf16 %v1694, %v1693
        %v1705 = vpack.c.bf16 %v1696, %v1695
        %v1706 = vpack.c.bf16 %v1698, %v1697
        %v1707 = vld [vmem:[#allocation14] sm:$0xff]
        %v1708 = vld [vmem:[#allocation14 + $0x8] sm:$0xff]
        %v1709 = vld [vmem:[#allocation14 + $0x10] sm:$0xff]
        %v1710 = vld [vmem:[#allocation14 + $0x18] sm:$0xff]
        %v1711 = vld [vmem:[#allocation14 + $0x20] sm:$0xff]
        %v1712 = vld [vmem:[#allocation14 + $0x28] sm:$0xff]
        %v1713 = vld [vmem:[#allocation14 + $0x30] sm:$0xff]
        %v1714 = vld [vmem:[#allocation14 + $0x38] sm:$0xff]
        %v1715 = vld [vmem:[#allocation14 + $0x40] sm:$0xff]
        %v1716 = vld [vmem:[#allocation14 + $0x48] sm:$0xff]
        %v1717 = vld [vmem:[#allocation14 + $0x50] sm:$0xff]
        %v1718 = vld [vmem:[#allocation14 + $0x58] sm:$0xff]
        %v1719 = vld [vmem:[#allocation14 + $0x60] sm:$0xff]
        %v1720 = vld [vmem:[#allocation14 + $0x68] sm:$0xff]
        %v1721 = vld [vmem:[#allocation14 + $0x70] sm:$0xff]
        %v1722 = vld [vmem:[#allocation14 + $0x78] sm:$0xff]
        %v1723 = vld [vmem:[%s12] sm:$0x3]
        %v1725 = vperm.slane %v1723, 0
        %v1726 = vperm.slane %v1723, 1
        %v1745 = vunpack.c.l.b16 %v1707
        %v1746 = vunpack.c.h.b16 %v1707
        %v1747 = vunpack.c.l.b16 %v1708
        %v1748 = vunpack.c.h.b16 %v1708
        %v1749 = vunpack.c.l.b16 %v1709
        %v1750 = vunpack.c.h.b16 %v1709
        %v1751 = vunpack.c.l.b16 %v1710
        %v1752 = vunpack.c.h.b16 %v1710
        %v1753 = vunpack.c.l.b16 %v1711
        %v1754 = vunpack.c.h.b16 %v1711
        %v1755 = vunpack.c.l.b16 %v1712
        %v1756 = vunpack.c.h.b16 %v1712
        %v1757 = vunpack.c.l.b16 %v1713
        %v1758 = vunpack.c.h.b16 %v1713
        %v1759 = vunpack.c.l.b16 %v1714
        %v1760 = vunpack.c.h.b16 %v1714
        %v1761 = vunpack.c.l.b16 %v1715
        %v1762 = vunpack.c.h.b16 %v1715
        %v1763 = vunpack.c.l.b16 %v1716
        %v1764 = vunpack.c.h.b16 %v1716
        %v1765 = vunpack.c.l.b16 %v1717
        %v1766 = vunpack.c.h.b16 %v1717
        %v1767 = vunpack.c.l.b16 %v1718
        %v1768 = vunpack.c.h.b16 %v1718
        %v1769 = vunpack.c.l.b16 %v1719
        %v1770 = vunpack.c.h.b16 %v1719
        %v1771 = vunpack.c.l.b16 %v1720
        %v1772 = vunpack.c.h.b16 %v1720
        %v1773 = vunpack.c.l.b16 %v1721
        %v1774 = vunpack.c.h.b16 %v1721
        %v1775 = vunpack.c.l.b16 %v1722
        %v1776 = vunpack.c.h.b16 %v1722
        %v1777 = vpack.c.b16 %v1747, %v1745
        %v1778 = vpack.c.b16 %v1748, %v1746
        %v1779 = vpack.c.b16 %v1751, %v1749
        %v1780 = vpack.c.b16 %v1752, %v1750
        %v1781 = vpack.c.b16 %v1755, %v1753
        %v1782 = vpack.c.b16 %v1756, %v1754
        %v1783 = vpack.c.b16 %v1759, %v1757
        %v1784 = vpack.c.b16 %v1760, %v1758
        %v1785 = vpack.c.b16 %v1763, %v1761
        %v1786 = vpack.c.b16 %v1764, %v1762
        %v1787 = vpack.c.b16 %v1767, %v1765
        %v1788 = vpack.c.b16 %v1768, %v1766
        %v1789 = vpack.c.b16 %v1771, %v1769
        %v1790 = vpack.c.b16 %v1772, %v1770
        %v1791 = vpack.c.b16 %v1775, %v1773
        %v1792 = vpack.c.b16 %v1776, %v1774
        %1809 = vmatpush.bf16.msra.mxu0 %v1791
        %1810 = vmatpush.bf16.msra.mxu0 %v1789
        %1811 = vmatpush.bf16.msra.mxu0 %v1787
        %1812 = vmatpush.bf16.msra.mxu0 %v1785
        %1813 = vmatpush.bf16.msra.mxu0 %v1783
        %1814 = vmatpush.bf16.msra.mxu0 %v1781
        %1815 = vmatpush.bf16.msra.mxu0 %v1779
        %1816 = vmatpush.bf16.msra.mxu0 %v1777
        %1817 = vmatmul.bf16.gmra.mxu0 %v1699
        %v1818 = vpop.f32.mrf.mxu0
        %v1819 = vadd.f32 %v1725, %v1818
        %v1820 = vpop.f32.mrf.mxu0
        %v1821 = vadd.f32 %v1725, %v1820
        %1822 = vmatmul.bf16.gmra.mxu0 %v1700
        %v1823 = vpop.f32.mrf.mxu0
        %v1824 = vadd.f32 %v1725, %v1823
        %v1825 = vpop.f32.mrf.mxu0
        %v1826 = vadd.f32 %v1725, %v1825
        %1827 = vmatmul.bf16.gmra.mxu0 %v1701
        %v1828 = vpop.f32.mrf.mxu0
        %v1829 = vadd.f32 %v1725, %v1828
        %v1830 = vpop.f32.mrf.mxu0
        %v1831 = vadd.f32 %v1725, %v1830
        %1832 = vmatmul.bf16.gmra.mxu0 %v1702
        %v1833 = vpop.f32.mrf.mxu0
        %v1834 = vadd.f32 %v1725, %v1833
        %v1835 = vpop.f32.mrf.mxu0
        %v1836 = vadd.f32 %v1725, %v1835
        %1837 = vmatmul.bf16.gmra.mxu0 %v1703
        %v1838 = vpop.f32.mrf.mxu0
        %v1839 = vadd.f32 %v1725, %v1838
        %v1840 = vpop.f32.mrf.mxu0
        %v1841 = vadd.f32 %v1725, %v1840
        %1842 = vmatmul.bf16.gmra.mxu0 %v1704
        %v1843 = vpop.f32.mrf.mxu0
        %v1844 = vadd.f32 %v1725, %v1843
        %v1845 = vpop.f32.mrf.mxu0
        %v1846 = vadd.f32 %v1725, %v1845
        %1847 = vmatmul.bf16.gmra.mxu0 %v1705
        %v1848 = vpop.f32.mrf.mxu0
        %v1849 = vadd.f32 %v1725, %v1848
        %v1850 = vpop.f32.mrf.mxu0
        %v1851 = vadd.f32 %v1725, %v1850
        %1852 = vmatmul.bf16.gmra.mxu0 %v1706
        %v1853 = vpop.f32.mrf.mxu0
        %v1854 = vadd.f32 %v1725, %v1853
        %v1855 = vpop.f32.mrf.mxu0
        %v1856 = vadd.f32 %v1725, %v1855
        %1857 = vdwg.mxu0
        %1858 = vmatpush.bf16.msra.mxu0 %v1792
        %1859 = vmatpush.bf16.msra.mxu0 %v1790
        %1860 = vmatpush.bf16.msra.mxu0 %v1788
        %1861 = vmatpush.bf16.msra.mxu0 %v1786
        %1862 = vmatpush.bf16.msra.mxu0 %v1784
        %1863 = vmatpush.bf16.msra.mxu0 %v1782
        %1864 = vmatpush.bf16.msra.mxu0 %v1780
        %1865 = vmatpush.bf16.msra.mxu0 %v1778
        %1866 = vmatmul.bf16.gmra.mxu0 %v1699
        %v1867 = vpop.f32.mrf.mxu0
        %v1868 = vadd.f32 %v1726, %v1867
        %v1869 = vpop.f32.mrf.mxu0
        %v1870 = vadd.f32 %v1726, %v1869
        %1871 = vmatmul.bf16.gmra.mxu0 %v1700
        %v1872 = vpop.f32.mrf.mxu0
        %v1873 = vadd.f32 %v1726, %v1872
        %v1874 = vpop.f32.mrf.mxu0
        %v1875 = vadd.f32 %v1726, %v1874
        %1876 = vmatmul.bf16.gmra.mxu0 %v1701
        %v1877 = vpop.f32.mrf.mxu0
        %v1878 = vadd.f32 %v1726, %v1877
        %v1879 = vpop.f32.mrf.mxu0
        %v1880 = vadd.f32 %v1726, %v1879
        %1881 = vmatmul.bf16.gmra.mxu0 %v1702
        %v1882 = vpop.f32.mrf.mxu0
        %v1883 = vadd.f32 %v1726, %v1882
        %v1884 = vpop.f32.mrf.mxu0
        %v1885 = vadd.f32 %v1726, %v1884
        %1886 = vmatmul.bf16.gmra.mxu0 %v1703
        %v1887 = vpop.f32.mrf.mxu0
        %v1888 = vadd.f32 %v1726, %v1887
        %v1889 = vpop.f32.mrf.mxu0
        %v1890 = vadd.f32 %v1726, %v1889
        %1891 = vmatmul.bf16.gmra.mxu0 %v1704
        %v1892 = vpop.f32.mrf.mxu0
        %v1893 = vadd.f32 %v1726, %v1892
        %v1894 = vpop.f32.mrf.mxu0
        %v1895 = vadd.f32 %v1726, %v1894
        %1896 = vmatmul.bf16.gmra.mxu0 %v1705
        %v1897 = vpop.f32.mrf.mxu0
        %v1898 = vadd.f32 %v1726, %v1897
        %v1899 = vpop.f32.mrf.mxu0
        %v1900 = vadd.f32 %v1726, %v1899
        %1901 = vmatmul.bf16.gmra.mxu0 %v1706
        %v1902 = vpop.f32.mrf.mxu0
        %v1903 = vadd.f32 %v1726, %v1902
        %v1904 = vpop.f32.mrf.mxu0
        %v1905 = vadd.f32 %v1726, %v1904
        %1906 = vdwg.mxu0
        %vm1907 = vcmp.gt.f32.partialorder %v1819, 0.0
        %vm1908 = vcmp.gt.f32.partialorder %v1868, 0.0
        %vm1909 = vcmp.gt.f32.partialorder %v1821, 0.0
        %vm1910 = vcmp.gt.f32.partialorder %v1870, 0.0
        %vm1911 = vcmp.gt.f32.partialorder %v1824, 0.0
        %vm1912 = vcmp.gt.f32.partialorder %v1873, 0.0
        %vm1913 = vcmp.gt.f32.partialorder %v1826, 0.0
        %vm1914 = vcmp.gt.f32.partialorder %v1875, 0.0
        %vm1915 = vcmp.gt.f32.partialorder %v1829, 0.0
        %vm1916 = vcmp.gt.f32.partialorder %v1878, 0.0
        %vm1917 = vcmp.gt.f32.partialorder %v1831, 0.0
        %vm1918 = vcmp.gt.f32.partialorder %v1880, 0.0
        %vm1919 = vcmp.gt.f32.partialorder %v1834, 0.0
        %vm1920 = vcmp.gt.f32.partialorder %v1883, 0.0
        %vm1921 = vcmp.gt.f32.partialorder %v1836, 0.0
        %vm1922 = vcmp.gt.f32.partialorder %v1885, 0.0
        %vm1923 = vcmp.gt.f32.partialorder %v1839, 0.0
        %vm1924 = vcmp.gt.f32.partialorder %v1888, 0.0
        %vm1925 = vcmp.gt.f32.partialorder %v1841, 0.0
        %vm1926 = vcmp.gt.f32.partialorder %v1890, 0.0
        %vm1927 = vcmp.gt.f32.partialorder %v1844, 0.0
        %vm1928 = vcmp.gt.f32.partialorder %v1893, 0.0
        %vm1929 = vcmp.gt.f32.partialorder %v1846, 0.0
        %vm1930 = vcmp.gt.f32.partialorder %v1895, 0.0
        %vm1931 = vcmp.gt.f32.partialorder %v1849, 0.0
        %vm1932 = vcmp.gt.f32.partialorder %v1898, 0.0
        %vm1933 = vcmp.gt.f32.partialorder %v1851, 0.0
        %vm1934 = vcmp.gt.f32.partialorder %v1900, 0.0
        %vm1935 = vcmp.gt.f32.partialorder %v1854, 0.0
        %vm1936 = vcmp.gt.f32.partialorder %v1903, 0.0
        %vm1937 = vcmp.gt.f32.partialorder %v1856, 0.0
        %vm1938 = vcmp.gt.f32.partialorder %v1905, 0.0
        %v1939 = vmul.f32 %v1819, 0.1
        %v1940 = vmul.f32 %v1868, 0.1
        %v1941 = vmul.f32 %v1821, 0.1
        %v1942 = vmul.f32 %v1870, 0.1
        %v1943 = vmul.f32 %v1824, 0.1
        %v1944 = vmul.f32 %v1873, 0.1
        %v1945 = vmul.f32 %v1826, 0.1
        %v1946 = vmul.f32 %v1875, 0.1
        %v1947 = vmul.f32 %v1829, 0.1
        %v1948 = vmul.f32 %v1878, 0.1
        %v1949 = vmul.f32 %v1831, 0.1
        %v1950 = vmul.f32 %v1880, 0.1
        %v1951 = vmul.f32 %v1834, 0.1
        %v1952 = vmul.f32 %v1883, 0.1
        %v1953 = vmul.f32 %v1836, 0.1
        %v1954 = vmul.f32 %v1885, 0.1
        %v1955 = vmul.f32 %v1839, 0.1
        %v1956 = vmul.f32 %v1888, 0.1
        %v1957 = vmul.f32 %v1841, 0.1
        %v1958 = vmul.f32 %v1890, 0.1
        %v1959 = vmul.f32 %v1844, 0.1
        %v1960 = vmul.f32 %v1893, 0.1
        %v1961 = vmul.f32 %v1846, 0.1
        %v1962 = vmul.f32 %v1895, 0.1
        %v1963 = vmul.f32 %v1849, 0.1
        %v1964 = vmul.f32 %v1898, 0.1
        %v1965 = vmul.f32 %v1851, 0.1
        %v1966 = vmul.f32 %v1900, 0.1
        %v1967 = vmul.f32 %v1854, 0.1
        %v1968 = vmul.f32 %v1903, 0.1
        %v1969 = vmul.f32 %v1856, 0.1
        %v1970 = vmul.f32 %v1905, 0.1
        %v1971 = vsel %vm1907, %v1819, %v1939
        %v1972 = vsel %vm1908, %v1868, %v1940
        %v1973 = vsel %vm1909, %v1821, %v1941
        %v1974 = vsel %vm1910, %v1870, %v1942
        %v1975 = vsel %vm1911, %v1824, %v1943
        %v1976 = vsel %vm1912, %v1873, %v1944
        %v1977 = vsel %vm1913, %v1826, %v1945
        %v1978 = vsel %vm1914, %v1875, %v1946
        %v1979 = vsel %vm1915, %v1829, %v1947
        %v1980 = vsel %vm1916, %v1878, %v1948
        %v1981 = vsel %vm1917, %v1831, %v1949
        %v1982 = vsel %vm1918, %v1880, %v1950
        %v1983 = vsel %vm1919, %v1834, %v1951
        %v1984 = vsel %vm1920, %v1883, %v1952
        %v1985 = vsel %vm1921, %v1836, %v1953
        %v1986 = vsel %vm1922, %v1885, %v1954
        %v1987 = vsel %vm1923, %v1839, %v1955
        %v1988 = vsel %vm1924, %v1888, %v1956
        %v1989 = vsel %vm1925, %v1841, %v1957
        %v1990 = vsel %vm1926, %v1890, %v1958
        %v1991 = vsel %vm1927, %v1844, %v1959
        %v1992 = vsel %vm1928, %v1893, %v1960
        %v1993 = vsel %vm1929, %v1846, %v1961
        %v1994 = vsel %vm1930, %v1895, %v1962
        %v1995 = vsel %vm1931, %v1849, %v1963
        %v1996 = vsel %vm1932, %v1898, %v1964
        %v1997 = vsel %vm1933, %v1851, %v1965
        %v1998 = vsel %vm1934, %v1900, %v1966
        %v1999 = vsel %vm1935, %v1854, %v1967
        %v2000 = vsel %vm1936, %v1903, %v1968
        %v2001 = vsel %vm1937, %v1856, %v1969
        %v2002 = vsel %vm1938, %v1905, %v1970
        %v2003 = vsub.f32 0.0, %v1971
        %v2004 = vsub.f32 0.0, %v1972
        %v2005 = vsub.f32 0.0, %v1973
        %v2006 = vsub.f32 0.0, %v1974
        %v2007 = vsub.f32 0.0, %v1975
        %v2008 = vsub.f32 0.0, %v1976
        %v2009 = vsub.f32 0.0, %v1977
        %v2010 = vsub.f32 0.0, %v1978
        %v2011 = vsub.f32 0.0, %v1979
        %v2012 = vsub.f32 0.0, %v1980
        %v2013 = vsub.f32 0.0, %v1981
        %v2014 = vsub.f32 0.0, %v1982
        %v2015 = vsub.f32 0.0, %v1983
        %v2016 = vsub.f32 0.0, %v1984
        %v2017 = vsub.f32 0.0, %v1985
        %v2018 = vsub.f32 0.0, %v1986
        %v2019 = vsub.f32 0.0, %v1987
        %v2020 = vsub.f32 0.0, %v1988
        %v2021 = vsub.f32 0.0, %v1989
        %v2022 = vsub.f32 0.0, %v1990
        %v2023 = vsub.f32 0.0, %v1991
        %v2024 = vsub.f32 0.0, %v1992
        %v2025 = vsub.f32 0.0, %v1993
        %v2026 = vsub.f32 0.0, %v1994
        %v2027 = vsub.f32 0.0, %v1995
        %v2028 = vsub.f32 0.0, %v1996
        %v2029 = vsub.f32 0.0, %v1997
        %v2030 = vsub.f32 0.0, %v1998
        %v2031 = vsub.f32 0.0, %v1999
        %v2032 = vsub.f32 0.0, %v2000
        %v2033 = vsub.f32 0.0, %v2001
        %v2034 = vsub.f32 0.0, %v2002
        %v2035 = vmul.f32 %v2003, 1.442695
        %v2036 = vpow.pop %v2035
        %v2037 = vmul.f32 %v2004, 1.442695
        %v2038 = vpow.pop %v2037
        %v2039 = vmul.f32 %v2005, 1.442695
        %v2040 = vpow.pop %v2039
        %v2041 = vmul.f32 %v2006, 1.442695
        %v2042 = vpow.pop %v2041
        %v2043 = vmul.f32 %v2007, 1.442695
        %v2044 = vpow.pop %v2043
        %v2045 = vmul.f32 %v2008, 1.442695
        %v2046 = vpow.pop %v2045
        %v2047 = vmul.f32 %v2009, 1.442695
        %v2048 = vpow.pop %v2047
        %v2049 = vmul.f32 %v2010, 1.442695
        %v2050 = vpow.pop %v2049
        %v2051 = vmul.f32 %v2011, 1.442695
        %v2052 = vpow.pop %v2051
        %v2053 = vmul.f32 %v2012, 1.442695
        %v2054 = vpow.pop %v2053
        %v2055 = vmul.f32 %v2013, 1.442695
        %v2056 = vpow.pop %v2055
        %v2057 = vmul.f32 %v2014, 1.442695
        %v2058 = vpow.pop %v2057
        %v2059 = vmul.f32 %v2015, 1.442695
        %v2060 = vpow.pop %v2059
        %v2061 = vmul.f32 %v2016, 1.442695
        %v2062 = vpow.pop %v2061
        %v2063 = vmul.f32 %v2017, 1.442695
        %v2064 = vpow.pop %v2063
        %v2065 = vmul.f32 %v2018, 1.442695
        %v2066 = vpow.pop %v2065
        %v2067 = vmul.f32 %v2019, 1.442695
        %v2068 = vpow.pop %v2067
        %v2069 = vmul.f32 %v2020, 1.442695
        %v2070 = vpow.pop %v2069
        %v2071 = vmul.f32 %v2021, 1.442695
        %v2072 = vpow.pop %v2071
        %v2073 = vmul.f32 %v2022, 1.442695
        %v2074 = vpow.pop %v2073
        %v2075 = vmul.f32 %v2023, 1.442695
        %v2076 = vpow.pop %v2075
        %v2077 = vmul.f32 %v2024, 1.442695
        %v2078 = vpow.pop %v2077
        %v2079 = vmul.f32 %v2025, 1.442695
        %v2080 = vpow.pop %v2079
        %v2081 = vmul.f32 %v2026, 1.442695
        %v2082 = vpow.pop %v2081
        %v2083 = vmul.f32 %v2027, 1.442695
        %v2084 = vpow.pop %v2083
        %v2085 = vmul.f32 %v2028, 1.442695
        %v2086 = vpow.pop %v2085
        %v2087 = vmul.f32 %v2029, 1.442695
        %v2088 = vpow.pop %v2087
        %v2089 = vmul.f32 %v2030, 1.442695
        %v2090 = vpow.pop %v2089
        %v2091 = vmul.f32 %v2031, 1.442695
        %v2092 = vpow.pop %v2091
        %v2093 = vmul.f32 %v2032, 1.442695
        %v2094 = vpow.pop %v2093
        %v2095 = vmul.f32 %v2033, 1.442695
        %v2096 = vpow.pop %v2095
        %v2097 = vmul.f32 %v2034, 1.442695
        %v2098 = vpow.pop %v2097
        %v2099 = vadd.f32 %v2036, 1.0
        %v2100 = vadd.f32 %v2038, 1.0
        %v2101 = vadd.f32 %v2040, 1.0
        %v2102 = vadd.f32 %v2042, 1.0
        %v2103 = vadd.f32 %v2044, 1.0
        %v2104 = vadd.f32 %v2046, 1.0
        %v2105 = vadd.f32 %v2048, 1.0
        %v2106 = vadd.f32 %v2050, 1.0
        %v2107 = vadd.f32 %v2052, 1.0
        %v2108 = vadd.f32 %v2054, 1.0
        %v2109 = vadd.f32 %v2056, 1.0
        %v2110 = vadd.f32 %v2058, 1.0
        %v2111 = vadd.f32 %v2060, 1.0
        %v2112 = vadd.f32 %v2062, 1.0
        %v2113 = vadd.f32 %v2064, 1.0
        %v2114 = vadd.f32 %v2066, 1.0
        %v2115 = vadd.f32 %v2068, 1.0
        %v2116 = vadd.f32 %v2070, 1.0
        %v2117 = vadd.f32 %v2072, 1.0
        %v2118 = vadd.f32 %v2074, 1.0
        %v2119 = vadd.f32 %v2076, 1.0
        %v2120 = vadd.f32 %v2078, 1.0
        %v2121 = vadd.f32 %v2080, 1.0
        %v2122 = vadd.f32 %v2082, 1.0
        %v2123 = vadd.f32 %v2084, 1.0
        %v2124 = vadd.f32 %v2086, 1.0
        %v2125 = vadd.f32 %v2088, 1.0
        %v2126 = vadd.f32 %v2090, 1.0
        %v2127 = vadd.f32 %v2092, 1.0
        %v2128 = vadd.f32 %v2094, 1.0
        %v2129 = vadd.f32 %v2096, 1.0
        %v2130 = vadd.f32 %v2098, 1.0
        %v2131 = vrcp.pop %v2099
        %v2132 = vrcp.pop %v2100
        %v2133 = vrcp.pop %v2101
        %v2134 = vrcp.pop %v2102
        %v2135 = vrcp.pop %v2103
        %v2136 = vrcp.pop %v2104
        %v2137 = vrcp.pop %v2105
        %v2138 = vrcp.pop %v2106
        %v2139 = vrcp.pop %v2107
        %v2140 = vrcp.pop %v2108
        %v2141 = vrcp.pop %v2109
        %v2142 = vrcp.pop %v2110
        %v2143 = vrcp.pop %v2111
        %v2144 = vrcp.pop %v2112
        %v2145 = vrcp.pop %v2113
        %v2146 = vrcp.pop %v2114
        %v2147 = vrcp.pop %v2115
        %v2148 = vrcp.pop %v2116
        %v2149 = vrcp.pop %v2117
        %v2150 = vrcp.pop %v2118
        %v2151 = vrcp.pop %v2119
        %v2152 = vrcp.pop %v2120
        %v2153 = vrcp.pop %v2121
        %v2154 = vrcp.pop %v2122
        %v2155 = vrcp.pop %v2123
        %v2156 = vrcp.pop %v2124
        %v2157 = vrcp.pop %v2125
        %v2158 = vrcp.pop %v2126
        %v2159 = vrcp.pop %v2127
        %v2160 = vrcp.pop %v2128
        %v2161 = vrcp.pop %v2129
        %v2162 = vrcp.pop %v2130
        %2163 = vst [vmem:[%s613] sm:$0xff] %v2131
        %2164 = vst [vmem:[%s613 + $0x8] sm:$0xff] %v2132
        %2165 = vst [vmem:[%s613 + $0x10] sm:$0xff] %v2133
        %2166 = vst [vmem:[%s613 + $0x18] sm:$0xff] %v2134
        %2167 = vst [vmem:[%s613 + $0x20] sm:$0xff] %v2135
        %2168 = vst [vmem:[%s613 + $0x28] sm:$0xff] %v2136
        %2169 = vst [vmem:[%s613 + $0x30] sm:$0xff] %v2137
        %2170 = vst [vmem:[%s613 + $0x38] sm:$0xff] %v2138
        %2171 = vst [vmem:[%s613 + $0x40] sm:$0xff] %v2139
        %2172 = vst [vmem:[%s613 + $0x48] sm:$0xff] %v2140
        %2173 = vst [vmem:[%s613 + $0x50] sm:$0xff] %v2141
        %2174 = vst [vmem:[%s613 + $0x58] sm:$0xff] %v2142
        %2175 = vst [vmem:[%s613 + $0x60] sm:$0xff] %v2143
        %2176 = vst [vmem:[%s613 + $0x68] sm:$0xff] %v2144
        %2177 = vst [vmem:[%s613 + $0x70] sm:$0xff] %v2145
        %2178 = vst [vmem:[%s613 + $0x78] sm:$0xff] %v2146
        %2179 = vst [vmem:[%s613 + $0x80] sm:$0xff] %v2147
        %2180 = vst [vmem:[%s613 + $0x88] sm:$0xff] %v2148
        %2181 = vst [vmem:[%s613 + $0x90] sm:$0xff] %v2149
        %2182 = vst [vmem:[%s613 + $0x98] sm:$0xff] %v2150
        %2183 = vst [vmem:[%s613 + $0xa0] sm:$0xff] %v2151
        %2184 = vst [vmem:[%s613 + $0xa8] sm:$0xff] %v2152
        %2185 = vst [vmem:[%s613 + $0xb0] sm:$0xff] %v2153
        %2186 = vst [vmem:[%s613 + $0xb8] sm:$0xff] %v2154
        %2187 = vst [vmem:[%s613 + $0xc0] sm:$0xff] %v2155
        %2188 = vst [vmem:[%s613 + $0xc8] sm:$0xff] %v2156
        %2189 = vst [vmem:[%s613 + $0xd0] sm:$0xff] %v2157
        %2190 = vst [vmem:[%s613 + $0xd8] sm:$0xff] %v2158
        %2191 = vst [vmem:[%s613 + $0xe0] sm:$0xff] %v2159
        %2192 = vst [vmem:[%s613 + $0xe8] sm:$0xff] %v2160
        %2193 = vst [vmem:[%s613 + $0xf0] sm:$0xff] %v2161
        %2194 = vst [vmem:[%s613 + $0xf8] sm:$0xff] %v2162
        %s2195 = sand.u32 %s325, 1
        %s2196 = scalar_lea.sflag [#allocation4], %s2195
        %s2197 = sand.u32 %s325, 1
        %s2198 = smul.addr %s2197, 128
        %s2199 = scalar_lea.vmem [#allocation16], %s2198
        %s2200 = sand.u32 %s351, 1
        %s2201 = scalar_lea.sflag [#allocation18], %s2200
        %s2202 = sand.u32 %s351, 1
        %s2203 = smul.addr %s2202, 256
        %s2204 = scalar_lea.vmem [#allocation17], %s2203
        // Predicated region
        $region105: #{tpu_custom_call.1} parent=71 // pred_check
          %p2205 = pneg %p335
        $region106: #{tpu_custom_call.1} parent=71 // pred_check_branch
          %2207 = sbr.rel (%p2205) target = $region108
        $region107: #{tpu_custom_call.1} parent=71 // pred_region
          %s2208 = smul.u32 16, %s39
          %2210 = vsyncadd %s2196, 0
          %s2211 = smul.addr %s2208, 8
          %s2212 = scalar_lea.hbm %s13, %s2211
          %s2213 = sshll.u32 %s2199, 4
          %s2214 = int_to_ptr.vmem [resolvable:$true] %s2213
          %s2215 = sshll.u32 %s2212, 4
          %s2216 = int_to_ptr.hbm [resolvable:$true] %s2215
          %2221 = dma.vmem_to_hbm [thread:$0]  %s2214, 2048, %s2216, %s2196, 128, 128, 8
        $region108: #{tpu_custom_call.1} parent=71 // pred_fallthru
          _
        // Predicated region
        $region109: #{tpu_custom_call.1} parent=71 // pred_check
          %p2222 = pneg %p361
        $region110: #{tpu_custom_call.1} parent=71 // pred_check_branch
          %2224 = sbr.rel (%p2222) target = $region112
        $region111: #{tpu_custom_call.1} parent=71 // pred_region
          %s2225 = smul.u32 16, %s39
          %2227 = vsyncadd %s2201, 0
          %s2228 = smul.addr %s2225, 2
          %s2229 = smul.addr %s2228, 8
          %s2230 = scalar_lea.hbm %s14, %s2229
          %s2231 = sshll.u32 %s2204, 4
          %s2232 = int_to_ptr.vmem [resolvable:$true] %s2231
          %s2233 = sshll.u32 %s2230, 4
          %s2234 = int_to_ptr.hbm [resolvable:$true] %s2233
          %2239 = dma.vmem_to_hbm [thread:$0]  %s2232, 4096, %s2234, %s2201, 256, 256, 16
        $region112: #{tpu_custom_call.1} parent=71 // pred_fallthru
          _
      $region72: #{tpu_custom_call.1} parent=5 // pred_fallthru
        _
      %p2240 = scmp.le.s32.totalorder 2, %s34
      // Predicated region
      $region113: #{tpu_custom_call.1} parent=5 // pred_check
        %p2241 = pneg %p2240
      $region114: #{tpu_custom_call.1} parent=5 // pred_check_branch
        %2243 = sbr.rel (%p2241) target = $region116
      $region115: #{tpu_custom_call.1} parent=5 // pred_region
        %s2244 = ssub.s32 %s34, 2
        // Predicated region
        $region117: #{tpu_custom_call.1} parent=115 // pred_check
          %p2245 = pneg %p341
        $region118: #{tpu_custom_call.1} parent=115 // pred_check_branch
          %2247 = sbr.rel (%p2245) target = $region120
        $region119: #{tpu_custom_call.1} parent=115 // pred_region
          %s2248 = sand.u32 %s326, 1
          %s2249 = scalar_lea.sflag [#allocation4], %s2248
          %s2250 = sand.u32 %s326, 1
          %s2251 = smul.addr %s2250, 128
          %s2252 = scalar_lea.vmem [#allocation16], %s2251
          %2254 = dma.done %s2249, 2048
        $region120: #{tpu_custom_call.1} parent=115 // pred_fallthru
          _
        // Predicated region
        $region121: #{tpu_custom_call.1} parent=115 // pred_check
          %p2255 = pneg %p367
        $region122: #{tpu_custom_call.1} parent=115 // pred_check_branch
          %2257 = sbr.rel (%p2255) target = $region124
        $region123: #{tpu_custom_call.1} parent=115 // pred_region
          %s2258 = sand.u32 %s352, 1
          %s2259 = scalar_lea.sflag [#allocation18], %s2258
          %s2260 = sand.u32 %s352, 1
          %s2261 = smul.addr %s2260, 256
          %s2262 = scalar_lea.vmem [#allocation17], %s2261
          %2264 = dma.done %s2259, 4096
        $region124: #{tpu_custom_call.1} parent=115 // pred_fallthru
          _
      $region116: #{tpu_custom_call.1} parent=5 // pred_fallthru
        _
    $region6: #{tpu_custom_call.1} parent=1 // loop_footer
      %s38 = sadd.s32 1, %s34
    $region7: #{tpu_custom_call.1} parent=1 // loop_footer_branch
      %33 = sbr.rel target = $region3
    $region8: #{tpu_custom_call.1} parent=1 // loop_exit
      _
    %2265 = vsyncpa [#allocation3], 1
    %s2266 = scalar_lea.sflag [#allocation3], 1
    %2267 = vsyncpa %s2266, 1
    %2268 = vsyncpa [#allocation6], 1
    %2269 = vsyncpa [#allocation9], 1
    %2270 = vsyncpa [#allocation12], 1
    %2271 = vsyncpa [#allocation15], 1
    %2272 = vsyncpa [#allocation4], 1
    %s2273 = scalar_lea.sflag [#allocation4], 1
    %2274 = vsyncpa %s2273, 1
    %2275 = vsyncpa [#allocation18], 1
    %s2276 = scalar_lea.sflag [#allocation18], 1
    %2277 = vsyncpa %s2276, 1

</llo_original>
